<compile_context>
chip_gen: v7x
topology: tpu7x:2x2x1
jax: 0.10.0
libtpu: 0.0.40
codegen_flags: <defaults>
</compile_context>

<pallas_src>
import functools

import jax
import jax.numpy as jnp
from jax import lax
from jax.experimental import pallas as pl
from jax.experimental.pallas import tpu as pltpu

_SUBLANE = 8  # f32 sublane granularity for batch tiles


def _round_up(n: int, m: int) -> int:
    return ((n + m - 1) // m) * m


def _cdiv(a: int, b: int) -> int:
    return -(-a // b)


def _make_kernel(depth: int):
    """Fused MLP kernel: `depth` Linear layers with Tanh in between, final
    Linear, then out[:, 1] = log(1 + exp(out[:, 1])) + 1e-6 (softplus on col 1)."""

    def kernel(*refs):
        x_ref = refs[0]
        wb_refs = refs[1:1 + 2 * depth]
        o_ref = refs[1 + 2 * depth]

        h = x_ref[...].astype(jnp.float32)
        for i in range(depth):
            w = wb_refs[2 * i][...]                          # (in_i, out_i) f32 or bf16
            b = wb_refs[2 * i + 1][...].astype(jnp.float32)  # (1, out_i)
            # f32 weights: request a true f32 MXU matmul (explicit, kernel-local
            # precision -- no global config).  bf16 weights: native MXU dtype,
            # default precision, f32 accumulation.
            prec = lax.Precision.HIGHEST if w.dtype == jnp.float32 else None
            h = jnp.dot(h.astype(w.dtype), w,
                        preferred_element_type=jnp.float32,
                        precision=prec) + b
            if i < depth - 1:
                # Elementwise math stays f32 (v5e has no bf16 VPU/EUP).
                h = jnp.tanh(h)

        # out[:, 1] = log(1 + exp(out[:, 1])) + 1e-6 on the *unpadded* output
        # width, via a lane-select (no lane scatter / in-place column write).
        # Formula kept literally as in the torch module (not F.softplus).
        col = lax.broadcasted_iota(jnp.int32, h.shape, dimension=1)
        softplus = jnp.log(1.0 + jnp.exp(h)) + 1e-6
        h = jnp.where(col == 1, softplus, h)

        o_ref[...] = h.astype(o_ref.dtype)

    return kernel


def pack_params(params, weights_dtype=jnp.float32):
    """Pre-pack torch-layout params ONCE, outside the jitted forward.

    params: list of (W, b) with W shape (out_i, in_i) and b shape (out_i,),
            exactly as torch.nn.Linear stores them.
    Returns a list of (W_packed (in_i, out_i), b_packed (1, out_i)).
    No output-lane padding anymore; biases stay f32."""
    packed = []
    for W, b in params:
        Wt = jnp.asarray(W, jnp.float32).T            # (in, out): kernel does h @ W
        bb = jnp.asarray(b, jnp.float32).reshape(1, -1)
        packed.append((Wt.astype(weights_dtype), bb))
    return packed


def _choose_tile(batch: int, tile_b: int, sub: int):
    """Pick (tb, b_pad, grid): tb ~ batch/grid rounded to the sublane multiple,
    grid an even count >= 2 whenever batch > sub (so v7x's two TensorCores both
    get work), tb capped at tile_b to bound VMEM."""
    b_min = _round_up(batch, sub)
    if b_min <= sub:
        n_tiles = 1
    else:
        n_tiles = max(2, _cdiv(b_min, tile_b))
        if n_tiles % 2:
            n_tiles += 1
    tb = max(sub, _round_up(_cdiv(batch, n_tiles), sub))
    b_pad = _round_up(batch, tb)
    return tb, b_pad, b_pad // tb


@functools.partial(jax.jit, static_argnames=("tile_b", "out_dtype"))
def dnn_ensemble_forward(x, packed_params, *, tile_b: int = 2048, out_dtype=None):
    """Forward pass of DNN_Ensemble as one fused, batch-tiled Pallas kernel."""
    batch, in_f = x.shape
    depth = len(packed_params)
    out_f = packed_params[-1][0].shape[1]
    odt = jnp.dtype(out_dtype) if out_dtype is not None else jnp.dtype(x.dtype)

    # Sublane multiple for the batch-tile: 8 for 32-bit output, 16 for bf16, ...
    sub = max(_SUBLANE, 32 // odt.itemsize)
    tb, b_pad, grid = _choose_tile(batch, tile_b, sub)
    if b_pad != batch:
        x = jnp.pad(x, ((0, b_pad - batch), (0, 0)))

    inputs = [x]
    in_specs = [pl.BlockSpec((tb, in_f), lambda i: (i, 0))]
    for w, b in packed_params:
        inputs.append(w)
        in_specs.append(pl.BlockSpec(w.shape, lambda i: (0, 0)))  # VMEM-resident
        inputs.append(b)
        in_specs.append(pl.BlockSpec(b.shape, lambda i: (0, 0)))  # VMEM-resident

    out = pl.pallas_call(
        _make_kernel(depth),
        out_shape=jax.ShapeDtypeStruct((b_pad, out_f), odt),
        grid=(grid,),
        in_specs=in_specs,
        # Last block dim == full array dim (out_f), so no lane padding and no
        # wrapper-side lane slice; stores are masked but tiny (out_f cols).
        out_specs=pl.BlockSpec((tb, out_f), lambda i: (i, 0)),
        compiler_params=pltpu.CompilerParams(
            dimension_semantics=("parallel",),        # batch tiles independent
            vmem_limit_bytes=48 * 1024 * 1024,        # <= v7x 64 MiB physical
        ),
    )(*inputs)

    # Drop batch padding only (no lane padding to drop anymore).
    return out[:batch] if b_pad != batch else out


def _init_params(key, layers):
    """Deterministic init mirroring torch.nn.Linear shapes: W (out,in), b (out,)."""
    params = []
    for i in range(len(layers) - 1):
        fan_in, fan_out = layers[i], layers[i + 1]
        key, kw, kb = jax.random.split(key, 3)
        bound = 1.0 / jnp.sqrt(fan_in)
        W = jax.random.uniform(kw, (fan_out, fan_in), jnp.float32, -bound, bound)
        b = jax.random.uniform(kb, (fan_out,), jnp.float32, -bound, bound)
        params.append((W, b))
    return params


def _reference_forward(x, params):
    """Pure-JAX reference of DNN_Ensemble.forward."""
    h = x
    depth = len(params)
    for i, (W, b) in enumerate(params):
        h = h @ W.T + b
        if i < depth - 1:
            h = jnp.tanh(h)
    return h.at[:, 1].set(jnp.log(1.0 + jnp.exp(h[:, 1])) + 1e-6)


if __name__ == "__main__":
    key = jax.random.PRNGKey(0)
    layers = [8, 32, 32, 4]          # `layers` arg of DNN_Ensemble
    batch = 16

    key, kx = jax.random.split(key)
    x = jax.random.normal(kx, (batch, layers[0]), jnp.float32)
    params = _init_params(key, layers)

    # f32 weight path (explicit HIGHEST-precision dots inside the kernel).
    packed = pack_params(params)
    out = jax.block_until_ready(dnn_ensemble_forward(x, packed))

    # Reference under a *scoped* high-precision matmul context (no global config).
    with jax.default_matmul_precision("highest"):
        ref = jax.block_until_ready(_reference_forward(x, params))
    assert out.shape == (batch, layers[-1])
    assert jnp.allclose(out, ref, atol=1e-3, rtol=1e-3), "mismatch vs reference (f32)"

    # Larger, non-multiple-of-tile batch: exercises 2 pipelined grid steps
    # (both v7x TensorCores) plus minimal batch padding (515 -> 528 rows).
    key, kx2 = jax.random.split(key)
    x_big = jax.random.normal(kx2, (515, layers[0]), jnp.float32)
    out_big = jax.block_until_ready(dnn_ensemble_forward(x_big, packed))
    with jax.default_matmul_precision("highest"):
        ref_big = jax.block_until_ready(_reference_forward(x_big, params))
    assert out_big.shape == (515, layers[-1])
    assert jnp.allclose(out_big, ref_big, atol=1e-3, rtol=1e-3), "mismatch (big batch)"

    # bf16 weight storage (native MXU dtype on v6e/v7x); f32 accumulation and
    # f32 elementwise math keep accuracy close to the f32 reference.
    packed_bf16 = pack_params(params, weights_dtype=jnp.bfloat16)
    out_bf16 = jax.block_until_ready(dnn_ensemble_forward(x, packed_bf16))
    assert out_bf16.shape == (batch, layers[-1])
    assert jnp.allclose(out_bf16, ref, atol=5e-2, rtol=5e-2), "mismatch (bf16 weights)"

    print("KERNEL_OK")
</pallas_src>

<mosaic_0001>
module attributes {stable_mosaic.version = 11 : i64} {
  func.func @kernel(%arg0: i32, %arg1: memref<8x8xf32, #tpu.memory_space<vmem>>, %arg2: memref<8x32xf32, #tpu.memory_space<vmem>>, %arg3: memref<1x32xf32, #tpu.memory_space<vmem>>, %arg4: memref<32x32xf32, #tpu.memory_space<vmem>>, %arg5: memref<1x32xf32, #tpu.memory_space<vmem>>, %arg6: memref<32x4xf32, #tpu.memory_space<vmem>>, %arg7: memref<1x4xf32, #tpu.memory_space<vmem>>, %arg8: memref<8x4xf32, #tpu.memory_space<vmem>>) attributes {dimension_semantics = [#tpu.dimension_semantics<parallel>], iteration_bounds = array<i64: 2>, scalar_prefetch = 0 : i64, scratch_operands = 0 : i64, tpu.core_type = #tpu.core_type<tc>, window_params = [{transform_indices = @transform_0, window_bounds = array<i64: 8, 8>}, {pipeline_mode = #tpu.pipeline_mode<synchronous>, transform_indices = @transform_1, window_bounds = array<i64: 8, 32>}, {pipeline_mode = #tpu.pipeline_mode<synchronous>, transform_indices = @transform_2, window_bounds = array<i64: 1, 32>}, {pipeline_mode = #tpu.pipeline_mode<synchronous>, transform_indices = @transform_3, window_bounds = array<i64: 32, 32>}, {pipeline_mode = #tpu.pipeline_mode<synchronous>, transform_indices = @transform_4, window_bounds = array<i64: 1, 32>}, {pipeline_mode = #tpu.pipeline_mode<synchronous>, transform_indices = @transform_5, window_bounds = array<i64: 32, 4>}, {pipeline_mode = #tpu.pipeline_mode<synchronous>, transform_indices = @transform_6, window_bounds = array<i64: 1, 4>}, {transform_indices = @transform_7, window_bounds = array<i64: 8, 4>}]} {
    %c0 = arith.constant 0 : index
    %c0_0 = arith.constant 0 : index
    %0 = vector.load %arg1[%c0, %c0_0] : memref<8x8xf32, #tpu.memory_space<vmem>>, vector<8x8xf32>
    %c0_1 = arith.constant 0 : index
    %c0_2 = arith.constant 0 : index
    %1 = vector.load %arg2[%c0_1, %c0_2] : memref<8x32xf32, #tpu.memory_space<vmem>>, vector<8x32xf32>
    %c0_3 = arith.constant 0 : index
    %c0_4 = arith.constant 0 : index
    %2 = vector.load %arg3[%c0_3, %c0_4] : memref<1x32xf32, #tpu.memory_space<vmem>>, vector<1x32xf32>
    %cst = arith.constant dense<0.000000e+00> : vector<8x32xf32>
    %3 = tpu.matmul %0, %1, %cst {dimension_numbers = #tpu.dot_dimension_numbers<[1], [0], [0], [1], [0, 0, 1, 1], [], []>, precision = #tpu.contract_precision<fp32>} : vector<8x8xf32>, vector<8x32xf32>, vector<8x32xf32> -> vector<8x32xf32>
    %4 = vector.broadcast %2 : vector<1x32xf32> to vector<8x32xf32>
    %5 = arith.addf %3, %4 : vector<8x32xf32>
    %6 = math.tanh %5 : vector<8x32xf32>
    %c0_5 = arith.constant 0 : index
    %c0_6 = arith.constant 0 : index
    %7 = vector.load %arg4[%c0_5, %c0_6] : memref<32x32xf32, #tpu.memory_space<vmem>>, vector<32x32xf32>
    %c0_7 = arith.constant 0 : index
    %c0_8 = arith.constant 0 : index
    %8 = vector.load %arg5[%c0_7, %c0_8] : memref<1x32xf32, #tpu.memory_space<vmem>>, vector<1x32xf32>
    %cst_9 = arith.constant dense<0.000000e+00> : vector<8x32xf32>
    %9 = tpu.matmul %6, %7, %cst_9 {dimension_numbers = #tpu.dot_dimension_numbers<[1], [0], [0], [1], [0, 0, 1, 1], [], []>, precision = #tpu.contract_precision<fp32>} : vector<8x32xf32>, vector<32x32xf32>, vector<8x32xf32> -> vector<8x32xf32>
    %10 = vector.broadcast %8 : vector<1x32xf32> to vector<8x32xf32>
    %11 = arith.addf %9, %10 : vector<8x32xf32>
    %12 = math.tanh %11 : vector<8x32xf32>
    %c0_10 = arith.constant 0 : index
    %c0_11 = arith.constant 0 : index
    %13 = vector.load %arg6[%c0_10, %c0_11] : memref<32x4xf32, #tpu.memory_space<vmem>>, vector<32x4xf32>
    %c0_12 = arith.constant 0 : index
    %c0_13 = arith.constant 0 : index
    %14 = vector.load %arg7[%c0_12, %c0_13] : memref<1x4xf32, #tpu.memory_space<vmem>>, vector<1x4xf32>
    %cst_14 = arith.constant dense<0.000000e+00> : vector<8x4xf32>
    %15 = tpu.matmul %12, %13, %cst_14 {dimension_numbers = #tpu.dot_dimension_numbers<[1], [0], [0], [1], [0, 0, 1, 1], [], []>, precision = #tpu.contract_precision<fp32>} : vector<8x32xf32>, vector<32x4xf32>, vector<8x4xf32> -> vector<8x4xf32>
    %16 = vector.broadcast %14 : vector<1x4xf32> to vector<8x4xf32>
    %17 = arith.addf %15, %16 : vector<8x4xf32>
    %18 = tpu.iota {dimensions = array<i32: 1>} : vector<8x4xi32>
    %19 = math.exp %17 : vector<8x4xf32>
    %cst_15 = arith.constant 1.000000e+00 : f32
    %20 = vector.broadcast %cst_15 : f32 to vector<8x4xf32>
    %21 = arith.addf %20, %19 : vector<8x4xf32>
    %22 = math.log %21 : vector<8x4xf32>
    %cst_16 = arith.constant 9.99999997E-7 : f32
    %23 = vector.broadcast %cst_16 : f32 to vector<8x4xf32>
    %24 = arith.addf %22, %23 : vector<8x4xf32>
    %c1_i32 = arith.constant 1 : i32
    %25 = vector.broadcast %c1_i32 : i32 to vector<8x4xi32>
    %26 = arith.cmpi eq, %18, %25 : vector<8x4xi32>
    %27 = arith.select %26, %24, %17 : vector<8x4xi1>, vector<8x4xf32>
    %c0_17 = arith.constant 0 : index
    %c0_18 = arith.constant 0 : index
    %28 = vector.load %arg8[%c0_17, %c0_18] : memref<8x4xf32, #tpu.memory_space<vmem>>, vector<8x4xf32>
    tpu.vector_store %arg8[%c0_17, %c0_18], %27 {strides = array<i32>} : memref<8x4xf32, #tpu.memory_space<vmem>>, vector<8x4xf32>,
    return
  }
  func.func @transform_0(%arg0: i32) -> (i32, i32) {
    %c0_i32 = arith.constant 0 : i32
    %c0_i32_0 = arith.constant 0 : i32
    return %arg0, %c0_i32 : i32, i32
  }
  func.func @transform_1(%arg0: i32) -> (i32, i32) {
    %c0_i32 = arith.constant 0 : i32
    %c0_i32_0 = arith.constant 0 : i32
    %c0_i32_1 = arith.constant 0 : i32
    return %c0_i32, %c0_i32_0 : i32, i32
  }
  func.func @transform_2(%arg0: i32) -> (i32, i32) {
    %c0_i32 = arith.constant 0 : i32
    %c0_i32_0 = arith.constant 0 : i32
    %c0_i32_1 = arith.constant 0 : i32
    return %c0_i32, %c0_i32_0 : i32, i32
  }
  func.func @transform_3(%arg0: i32) -> (i32, i32) {
    %c0_i32 = arith.constant 0 : i32
    %c0_i32_0 = arith.constant 0 : i32
    %c0_i32_1 = arith.constant 0 : i32
    return %c0_i32, %c0_i32_0 : i32, i32
  }
  func.func @transform_4(%arg0: i32) -> (i32, i32) {
    %c0_i32 = arith.constant 0 : i32
    %c0_i32_0 = arith.constant 0 : i32
    %c0_i32_1 = arith.constant 0 : i32
    return %c0_i32, %c0_i32_0 : i32, i32
  }
  func.func @transform_5(%arg0: i32) -> (i32, i32) {
    %c0_i32 = arith.constant 0 : i32
    %c0_i32_0 = arith.constant 0 : i32
    %c0_i32_1 = arith.constant 0 : i32
    return %c0_i32, %c0_i32_0 : i32, i32
  }
  func.func @transform_6(%arg0: i32) -> (i32, i32) {
    %c0_i32 = arith.constant 0 : i32
    %c0_i32_0 = arith.constant 0 : i32
    %c0_i32_1 = arith.constant 0 : i32
    return %c0_i32, %c0_i32_0 : i32, i32
  }
  func.func @transform_7(%arg0: i32) -> (i32, i32) {
    %c0_i32 = arith.constant 0 : i32
    %c0_i32_0 = arith.constant 0 : i32
    return %arg0, %c0_i32 : i32, i32
  }
}

</mosaic_0001>

<llo_original>
// kernel: dnn_ensemble_forward.1
$region0: #{dnn_ensemble_forward.1}
  #allocation0 [shape = 'u32[]', space=smem, size = 0x4, offset = 0x4, fixed_abs, tag = 'smem constant byte address 0x4 - core index']
  #allocation1 [shape = 'u32[144,128]{1,0:T(1,128)}', space=vmem, size = 0x12000, scoped, tag = 'internal scratch']
  %s0 = inlined_call_operand.vmem [shape: f32[16,8], index: 0, kind: input, shape index: {}]
  %s1 = inlined_call_operand.vmem [shape: f32[8,32], index: 1, kind: input, shape index: {}]
  %s2 = inlined_call_operand.vmem [shape: f32[1,32], index: 2, kind: input, shape index: {}]
  %s3 = inlined_call_operand.vmem [shape: f32[32,32], index: 3, kind: input, shape index: {}]
  %s4 = inlined_call_operand.vmem [shape: f32[1,32], index: 4, kind: input, shape index: {}]
  %s5 = inlined_call_operand.vmem [shape: f32[32,4], index: 5, kind: input, shape index: {}]
  %s6 = inlined_call_operand.vmem [shape: f32[1,4], index: 6, kind: input, shape index: {}]
  %s7 = inlined_call_operand.vmem [shape: f32[16,4], index: 7, kind: output, shape index: {}]
  %s8 = sld [smem:[#allocation0]]
  $region61: #{dnn_ensemble_forward.1} parent=0
    _
  %s10 = ssub.s32 1, %s8
  %s11 = scalar_select 0, %s10, %s8
  loop: start=0, step=1, limit=4
  $region2: #{dnn_ensemble_forward.1} parent=0 // loop_pre_header
    _
  $region3: #{dnn_ensemble_forward.1} parent=0 // loop_header
    %s13 = sphi 0, %s17
    %p14 = scmp.ge.s32.totalorder %s13, 4
    %s23 = sphi 0, %s25
    %s26 = sphi 0, %s23
    %s27 = sphi 0, %s26
    %s43 = sphi 0, %s27
    %s47 = sphi 0, %s47
    %s49 = sphi 0, %s47
    %s50 = sphi 0, %s49
    %s64 = sphi 0, %s50
    %s68 = sphi 0, %s68
    %s70 = sphi 0, %s68
    %s71 = sphi 0, %s70
    %s85 = sphi 0, %s71
    %s89 = sphi 0, %s89
    %s91 = sphi 0, %s89
    %s92 = sphi 0, %s91
    %s106 = sphi 0, %s92
    %s110 = sphi 0, %s110
    %s112 = sphi 0, %s110
    %s113 = sphi 0, %s112
    %s127 = sphi 0, %s113
    %s131 = sphi 0, %s131
    %s133 = sphi 0, %s131
    %s134 = sphi 0, %s133
    %s148 = sphi 0, %s134
    %s152 = sphi 0, %s152
    %s154 = sphi 0, %s152
    %s155 = sphi 0, %s154
    %s169 = sphi 0, %s155
    %s175 = sphi 0, %s177
    %s178 = sphi 0, %s175
    %s179 = sphi 0, %s178
    %s195 = sphi 0, %s179
  $region4: #{dnn_ensemble_forward.1} parent=0 // loop_header_branch
    %16 = sbr.rel (%p14) target = $region8
  $region5: #{dnn_ensemble_forward.1} parent=0 // loop_body
    %s18 = ssub.s32 %s13, 1
    %s19 = ssub.s32 %s13, 2
    %s20 = sadd.s32 %s13, 1
    %s21 = ssub.s32 %s13, %s20
    %p22 = scmp.eq.s32.totalorder %s21, 0
    %s24 = sadd.s32 %s23, 1
    %s25 = scalar_select %p22, %s23, %s24
    %p28 = pneg %p22
    %p29 = scmp.eq.s32.totalorder %s13, 1
    %p30 = por %p28, %p29
    %p31 = scmp.ne.s32.totalorder %s23, %s26
    %p32 = scmp.eq.s32.totalorder %s13, 0
    %p33 = por %p31, %p32
    %p34 = scmp.ne.s32.totalorder %s23, %s26
    %p35 = scmp.eq.s32.totalorder %s18, 1
    %p36 = por %p34, %p35
    %p37 = scmp.ne.s32.totalorder %s26, %s27
    %p38 = scmp.eq.s32.totalorder %s18, 0
    %p39 = por %p37, %p38
    %p40 = scmp.ne.s32.totalorder %s26, %s27
    %p41 = scmp.eq.s32.totalorder %s19, 1
    %p42 = por %p40, %p41
    %p44 = scmp.ne.s32.totalorder %s27, %s43
    %p45 = scmp.eq.s32.totalorder %s19, 0
    %p46 = por %p44, %p45
    %s48 = sadd.s32 %s47, 1
    %p51 = scmp.eq.s32.totalorder %s13, 1
    %p52 = scmp.ne.s32.totalorder %s47, %s49
    %p53 = scmp.eq.s32.totalorder %s13, 0
    %p54 = por %p52, %p53
    %p55 = scmp.ne.s32.totalorder %s47, %s49
    %p56 = scmp.eq.s32.totalorder %s18, 1
    %p57 = por %p55, %p56
    %p58 = scmp.ne.s32.totalorder %s49, %s50
    %p59 = scmp.eq.s32.totalorder %s18, 0
    %p60 = por %p58, %p59
    %p61 = scmp.ne.s32.totalorder %s49, %s50
    %p62 = scmp.eq.s32.totalorder %s19, 1
    %p63 = por %p61, %p62
    %p65 = scmp.ne.s32.totalorder %s50, %s64
    %p66 = scmp.eq.s32.totalorder %s19, 0
    %p67 = por %p65, %p66
    %s69 = sadd.s32 %s68, 1
    %p72 = scmp.eq.s32.totalorder %s13, 1
    %p73 = scmp.ne.s32.totalorder %s68, %s70
    %p74 = scmp.eq.s32.totalorder %s13, 0
    %p75 = por %p73, %p74
    %p76 = scmp.ne.s32.totalorder %s68, %s70
    %p77 = scmp.eq.s32.totalorder %s18, 1
    %p78 = por %p76, %p77
    %p79 = scmp.ne.s32.totalorder %s70, %s71
    %p80 = scmp.eq.s32.totalorder %s18, 0
    %p81 = por %p79, %p80
    %p82 = scmp.ne.s32.totalorder %s70, %s71
    %p83 = scmp.eq.s32.totalorder %s19, 1
    %p84 = por %p82, %p83
    %p86 = scmp.ne.s32.totalorder %s71, %s85
    %p87 = scmp.eq.s32.totalorder %s19, 0
    %p88 = por %p86, %p87
    %s90 = sadd.s32 %s89, 1
    %p93 = scmp.eq.s32.totalorder %s13, 1
    %p94 = scmp.ne.s32.totalorder %s89, %s91
    %p95 = scmp.eq.s32.totalorder %s13, 0
    %p96 = por %p94, %p95
    %p97 = scmp.ne.s32.totalorder %s89, %s91
    %p98 = scmp.eq.s32.totalorder %s18, 1
    %p99 = por %p97, %p98
    %p100 = scmp.ne.s32.totalorder %s91, %s92
    %p101 = scmp.eq.s32.totalorder %s18, 0
    %p102 = por %p100, %p101
    %p103 = scmp.ne.s32.totalorder %s91, %s92
    %p104 = scmp.eq.s32.totalorder %s19, 1
    %p105 = por %p103, %p104
    %p107 = scmp.ne.s32.totalorder %s92, %s106
    %p108 = scmp.eq.s32.totalorder %s19, 0
    %p109 = por %p107, %p108
    %s111 = sadd.s32 %s110, 1
    %p114 = scmp.eq.s32.totalorder %s13, 1
    %p115 = scmp.ne.s32.totalorder %s110, %s112
    %p116 = scmp.eq.s32.totalorder %s13, 0
    %p117 = por %p115, %p116
    %p118 = scmp.ne.s32.totalorder %s110, %s112
    %p119 = scmp.eq.s32.totalorder %s18, 1
    %p120 = por %p118, %p119
    %p121 = scmp.ne.s32.totalorder %s112, %s113
    %p122 = scmp.eq.s32.totalorder %s18, 0
    %p123 = por %p121, %p122
    %p124 = scmp.ne.s32.totalorder %s112, %s113
    %p125 = scmp.eq.s32.totalorder %s19, 1
    %p126 = por %p124, %p125
    %p128 = scmp.ne.s32.totalorder %s113, %s127
    %p129 = scmp.eq.s32.totalorder %s19, 0
    %p130 = por %p128, %p129
    %s132 = sadd.s32 %s131, 1
    %p135 = scmp.eq.s32.totalorder %s13, 1
    %p136 = scmp.ne.s32.totalorder %s131, %s133
    %p137 = scmp.eq.s32.totalorder %s13, 0
    %p138 = por %p136, %p137
    %p139 = scmp.ne.s32.totalorder %s131, %s133
    %p140 = scmp.eq.s32.totalorder %s18, 1
    %p141 = por %p139, %p140
    %p142 = scmp.ne.s32.totalorder %s133, %s134
    %p143 = scmp.eq.s32.totalorder %s18, 0
    %p144 = por %p142, %p143
    %p145 = scmp.ne.s32.totalorder %s133, %s134
    %p146 = scmp.eq.s32.totalorder %s19, 1
    %p147 = por %p145, %p146
    %p149 = scmp.ne.s32.totalorder %s134, %s148
    %p150 = scmp.eq.s32.totalorder %s19, 0
    %p151 = por %p149, %p150
    %s153 = sadd.s32 %s152, 1
    %p156 = scmp.eq.s32.totalorder %s13, 1
    %p157 = scmp.ne.s32.totalorder %s152, %s154
    %p158 = scmp.eq.s32.totalorder %s13, 0
    %p159 = por %p157, %p158
    %p160 = scmp.ne.s32.totalorder %s152, %s154
    %p161 = scmp.eq.s32.totalorder %s18, 1
    %p162 = por %p160, %p161
    %p163 = scmp.ne.s32.totalorder %s154, %s155
    %p164 = scmp.eq.s32.totalorder %s18, 0
    %p165 = por %p163, %p164
    %p166 = scmp.ne.s32.totalorder %s154, %s155
    %p167 = scmp.eq.s32.totalorder %s19, 1
    %p168 = por %p166, %p167
    %p170 = scmp.ne.s32.totalorder %s155, %s169
    %p171 = scmp.eq.s32.totalorder %s19, 0
    %p172 = por %p170, %p171
    %s173 = ssub.s32 %s13, %s20
    %p174 = scmp.eq.s32.totalorder %s173, 0
    %s176 = sadd.s32 %s175, 1
    %s177 = scalar_select %p174, %s175, %s176
    %p180 = pneg %p174
    %p181 = scmp.eq.s32.totalorder %s13, 1
    %p182 = por %p180, %p181
    %p183 = scmp.ne.s32.totalorder %s175, %s178
    %p184 = scmp.eq.s32.totalorder %s13, 0
    %p185 = por %p183, %p184
    %p186 = scmp.ne.s32.totalorder %s175, %s178
    %p187 = scmp.eq.s32.totalorder %s18, 1
    %p188 = por %p186, %p187
    %p189 = scmp.ne.s32.totalorder %s178, %s179
    %p190 = scmp.eq.s32.totalorder %s18, 0
    %p191 = por %p189, %p190
    %p192 = scmp.ne.s32.totalorder %s178, %s179
    %p193 = scmp.eq.s32.totalorder %s19, 1
    %p194 = por %p192, %p193
    %p196 = scmp.ne.s32.totalorder %s179, %s195
    %p197 = scmp.eq.s32.totalorder %s19, 0
    %p198 = por %p196, %p197
    %p199 = scmp.le.s32.totalorder 1, %s13
    %p200 = scmp.lt.s32.totalorder %s13, 3
    %p201 = pnand %p199, %p200
    %p202 = pneg %p201
    // Predicated region
    $region9: #{dnn_ensemble_forward.1} parent=5 // pred_check
      _
    $region10: #{dnn_ensemble_forward.1} parent=5 // pred_check_branch
      %204 = sbr.rel (%p201) target = $region12
    $region11: #{dnn_ensemble_forward.1} parent=5 // pred_region
      %s205 = ssub.s32 %s13, 1
      // Predicated region
      $region13: #{dnn_ensemble_forward.1} parent=11 // pred_check
        %p206 = pneg %p60
      $region14: #{dnn_ensemble_forward.1} parent=11 // pred_check_branch
        %208 = sbr.rel (%p206) target = $region16
      $region15: #{dnn_ensemble_forward.1} parent=11 // pred_region
        _
      $region16: #{dnn_ensemble_forward.1} parent=11 // pred_fallthru
        _
      // Predicated region
      $region17: #{dnn_ensemble_forward.1} parent=11 // pred_check
        %p209 = pneg %p81
      $region18: #{dnn_ensemble_forward.1} parent=11 // pred_check_branch
        %211 = sbr.rel (%p209) target = $region20
      $region19: #{dnn_ensemble_forward.1} parent=11 // pred_region
        _
      $region20: #{dnn_ensemble_forward.1} parent=11 // pred_fallthru
        _
      // Predicated region
      $region21: #{dnn_ensemble_forward.1} parent=11 // pred_check
        %p212 = pneg %p102
      $region22: #{dnn_ensemble_forward.1} parent=11 // pred_check_branch
        %214 = sbr.rel (%p212) target = $region24
      $region23: #{dnn_ensemble_forward.1} parent=11 // pred_region
        _
      $region24: #{dnn_ensemble_forward.1} parent=11 // pred_fallthru
        _
      // Predicated region
      $region25: #{dnn_ensemble_forward.1} parent=11 // pred_check
        %p215 = pneg %p123
      $region26: #{dnn_ensemble_forward.1} parent=11 // pred_check_branch
        %217 = sbr.rel (%p215) target = $region28
      $region27: #{dnn_ensemble_forward.1} parent=11 // pred_region
        _
      $region28: #{dnn_ensemble_forward.1} parent=11 // pred_fallthru
        _
      // Predicated region
      $region29: #{dnn_ensemble_forward.1} parent=11 // pred_check
        %p218 = pneg %p144
      $region30: #{dnn_ensemble_forward.1} parent=11 // pred_check_branch
        %220 = sbr.rel (%p218) target = $region32
      $region31: #{dnn_ensemble_forward.1} parent=11 // pred_region
        _
      $region32: #{dnn_ensemble_forward.1} parent=11 // pred_fallthru
        _
      // Predicated region
      $region33: #{dnn_ensemble_forward.1} parent=11 // pred_check
        %p221 = pneg %p165
      $region34: #{dnn_ensemble_forward.1} parent=11 // pred_check_branch
        %223 = sbr.rel (%p221) target = $region36
      $region35: #{dnn_ensemble_forward.1} parent=11 // pred_region
        _
      $region36: #{dnn_ensemble_forward.1} parent=11 // pred_fallthru
        _
    $region12: #{dnn_ensemble_forward.1} parent=5 // pred_fallthru
      _
    %p224 = scmp.lt.s32.totalorder %s13, 2
    // Predicated region
    $region37: #{dnn_ensemble_forward.1} parent=5 // pred_check
      %p225 = pneg %p224
    $region38: #{dnn_ensemble_forward.1} parent=5 // pred_check_branch
      %227 = sbr.rel (%p225) target = $region40
    $region39: #{dnn_ensemble_forward.1} parent=5 // pred_region
      // Predicated region
      $region41: #{dnn_ensemble_forward.1} parent=39 // pred_check
        %p228 = pneg %p33
      $region42: #{dnn_ensemble_forward.1} parent=39 // pred_check_branch
        %230 = sbr.rel (%p228) target = $region44
      $region43: #{dnn_ensemble_forward.1} parent=39 // pred_region
        %p231 = scmp.lt.s32.totalorder %s13, 1
        %s232 = scalar_select %p231, %s13, 1
        %s233 = smul.addr %s232, 8
        %s234 = scalar_lea.vmem %s0, %s233
      $region44: #{dnn_ensemble_forward.1} parent=39 // pred_fallthru
        _
    $region40: #{dnn_ensemble_forward.1} parent=5 // pred_fallthru
      _
    %p235 = scmp.le.s32.totalorder 1, %s13
    %p236 = scmp.lt.s32.totalorder %s13, 3
    %p237 = pnand %p235, %p236
    %p238 = pneg %p237
    // Predicated region
    $region45: #{dnn_ensemble_forward.1} parent=5 // pred_check
      _
    $region46: #{dnn_ensemble_forward.1} parent=5 // pred_check_branch
      %240 = sbr.rel (%p237) target = $region48
    $region47: #{dnn_ensemble_forward.1} parent=5 // pred_region
      %s241 = ssub.s32 %s13, 1
      %p242 = scmp.lt.s32.totalorder %s18, 1
      %s243 = scalar_select %p242, %s18, 1
      %s244 = smul.addr %s243, 8
      %s245 = scalar_lea.vmem %s0, %s244
      %p246 = pneg %p39
      %p247 = pneg %p36
      %p248 = pneg %p60
      %p249 = pneg %p57
      %p250 = pneg %p81
      %p251 = pneg %p78
      %p252 = pneg %p102
      %p253 = pneg %p99
      %p254 = pneg %p123
      %p255 = pneg %p120
      %p256 = pneg %p144
      %p257 = pneg %p141
      %p258 = pneg %p165
      %p259 = pneg %p162
      %p260 = pneg %p191
      %p261 = pneg %p188
      %p262 = scmp.lt.s32.totalorder %s18, 1
      %s263 = scalar_select %p262, %s18, 1
      %s264 = smul.addr %s263, 8
      %s265 = scalar_lea.vmem %s7, %s264
      %p266 = scmp.lt.s32.totalorder %s18, 1
      %s267 = scalar_select %p266, %s18, 1
      %s268 = smul.addr %s267, 8
      %s269 = scalar_lea.vmem %s0, %s268
      %p270 = scmp.lt.s32.totalorder %s18, 1
      %s271 = scalar_select %p270, %s18, 1
      %s272 = smul.addr %s271, 8
      %s273 = scalar_lea.vmem %s7, %s272
      %v274 = vld [vmem:[%s269] sm:$0xff]
      %v275 = vld [vmem:[%s1] sm:$0xff]
      %v276 = vld [vmem:[%s2] sm:$0x1]
      %v278 = vlaneseq
      %v279 = vshrl.u32 %v278, 7
      %v280 = vsub.s32 0, %v279
      %v281 = vrot.slane %v276, %v280
      %vm283 = vcmask 64512
      %v285 = vsel %vm283, %v274, 0
      %287 = vmatprep.subr.mxu0 0.0
      %v288 = vand.u32 %v275, 4294901760
      %289 = vmatpush1.msra.mxu0 %v288
      %290 = vmatprep.subr.mxu0 0.0
      %291 = vmatpush1.msra.mxu0 0.0
      %292 = vmatprep.subr.mxu0 0.0
      %293 = vmatpush1.msra.mxu0 0.0
      %294 = vmatprep.subr.mxu0 0.0
      %295 = vmatpush1.msra.mxu0 0.0
      %296 = vmatprep.subr.mxu0 0.0
      %297 = vmatpush1.msra.mxu0 0.0
      %298 = vmatprep.subr.mxu0 0.0
      %299 = vmatpush1.msra.mxu0 0.0
      %300 = vmatprep.subr.mxu0 0.0
      %301 = vmatpush1.msra.mxu0 0.0
      %302 = vmatprep.subr.mxu0 0.0
      %303 = vmatpush1.msra.mxu0 0.0
      %304 = vmatprep.subr.mxu0 0.0
      %305 = vmatpush1.msra.mxu0 0.0
      %306 = vmatprep.subr.mxu0 0.0
      %307 = vmatpush1.msra.mxu0 0.0
      %308 = vmatprep.subr.mxu0 0.0
      %309 = vmatpush1.msra.mxu0 0.0
      %310 = vmatprep.subr.mxu0 0.0
      %311 = vmatpush1.msra.mxu0 0.0
      %312 = vmatprep.subr.mxu0 0.0
      %313 = vmatpush1.msra.mxu0 0.0
      %314 = vmatprep.subr.mxu0 0.0
      %315 = vmatpush1.msra.mxu0 0.0
      %316 = vmatprep.subr.mxu0 0.0
      %317 = vmatpush1.msra.mxu0 0.0
      %318 = vmatprep.subr.mxu0 0.0
      %319 = vmatpush1.msra.mxu0 0.0
      %320 = vmatprep.subr.mxu0 0.0
      %321 = vmatpush1.msra.mxu0 0.0
      %322 = vmatprep.subr.mxu0 0.0
      %323 = vmatpush1.msra.mxu0 0.0
      %324 = vmatprep.subr.mxu0 0.0
      %325 = vmatpush1.msra.mxu0 0.0
      %326 = vmatprep.subr.mxu0 0.0
      %327 = vmatpush1.msra.mxu0 0.0
      %328 = vmatprep.subr.mxu0 0.0
      %329 = vmatpush1.msra.mxu0 0.0
      %330 = vmatprep.subr.mxu0 0.0
      %331 = vmatpush1.msra.mxu0 0.0
      %332 = vmatprep.subr.mxu0 0.0
      %333 = vmatpush1.msra.mxu0 0.0
      %334 = vmatprep.subr.mxu0 0.0
      %335 = vmatpush1.msra.mxu0 0.0
      %336 = vmatprep.subr.mxu0 0.0
      %337 = vmatpush1.msra.mxu0 0.0
      %338 = vmatprep.subr.mxu0 0.0
      %339 = vmatpush1.msra.mxu0 0.0
      %340 = vmatprep.subr.mxu0 0.0
      %341 = vmatpush1.msra.mxu0 0.0
      %342 = vmatprep.subr.mxu0 0.0
      %343 = vmatpush1.msra.mxu0 0.0
      %344 = vmatprep.subr.mxu0 0.0
      %345 = vmatpush1.msra.mxu0 0.0
      %346 = vmatprep.subr.mxu0 0.0
      %347 = vmatpush1.msra.mxu0 0.0
      %348 = vmatprep.subr.mxu0 0.0
      %349 = vmatpush1.msra.mxu0 0.0
      %350 = vmatprep.subr.mxu0 0.0
      %351 = vmatpush1.msra.mxu0 0.0
      %352 = vmatprep.mubr.f32.mxu0 0.0
      %v353 = vand.u32 %v285, 4294901760
      %v354 = vsub.f32 %v285, %v353
      %v355 = vand.u32 %v354, 4294901760
      %v356 = vsub.f32 %v354, %v355
      %v357 = vand.u32 %v356, 4294901760
      %358 = vmatmul.mubr.f32.gmra.mrb[0].mxu0 %v357
      %v359 = vpop.f32.mrb[0].mxu0
      %v360 = vadd.f32 %v281, %v359
      %v361 = vpop.f32.mrb[0].mxu0
      %362 = vdwg.mxu0
      %363 = vmatprep.subr.mxu0 0.0
      %v364 = vand.u32 %v275, 4294901760
      %v365 = vsub.f32 %v275, %v364
      %v366 = vand.u32 %v365, 4294901760
      %v367 = vsub.f32 %v365, %v366
      %v368 = vand.u32 %v367, 4294901760
      %369 = vmatpush1.msra.mxu0 %v368
      %370 = vmatprep.subr.mxu0 0.0
      %371 = vmatpush1.msra.mxu0 0.0
      %372 = vmatprep.subr.mxu0 0.0
      %373 = vmatpush1.msra.mxu0 0.0
      %374 = vmatprep.subr.mxu0 0.0
      %375 = vmatpush1.msra.mxu0 0.0
      %376 = vmatprep.subr.mxu0 0.0
      %377 = vmatpush1.msra.mxu0 0.0
      %378 = vmatprep.subr.mxu0 0.0
      %379 = vmatpush1.msra.mxu0 0.0
      %380 = vmatprep.subr.mxu0 0.0
      %381 = vmatpush1.msra.mxu0 0.0
      %382 = vmatprep.subr.mxu0 0.0
      %383 = vmatpush1.msra.mxu0 0.0
      %384 = vmatprep.subr.mxu0 0.0
      %385 = vmatpush1.msra.mxu0 0.0
      %386 = vmatprep.subr.mxu0 0.0
      %387 = vmatpush1.msra.mxu0 0.0
      %388 = vmatprep.subr.mxu0 0.0
      %389 = vmatpush1.msra.mxu0 0.0
      %390 = vmatprep.subr.mxu0 0.0
      %391 = vmatpush1.msra.mxu0 0.0
      %392 = vmatprep.subr.mxu0 0.0
      %393 = vmatpush1.msra.mxu0 0.0
      %394 = vmatprep.subr.mxu0 0.0
      %395 = vmatpush1.msra.mxu0 0.0
      %396 = vmatprep.subr.mxu0 0.0
      %397 = vmatpush1.msra.mxu0 0.0
      %398 = vmatprep.subr.mxu0 0.0
      %399 = vmatpush1.msra.mxu0 0.0
      %400 = vmatprep.subr.mxu0 0.0
      %401 = vmatpush1.msra.mxu0 0.0
      %402 = vmatprep.subr.mxu0 0.0
      %403 = vmatpush1.msra.mxu0 0.0
      %404 = vmatprep.subr.mxu0 0.0
      %405 = vmatpush1.msra.mxu0 0.0
      %406 = vmatprep.subr.mxu0 0.0
      %407 = vmatpush1.msra.mxu0 0.0
      %408 = vmatprep.subr.mxu0 0.0
      %409 = vmatpush1.msra.mxu0 0.0
      %410 = vmatprep.subr.mxu0 0.0
      %411 = vmatpush1.msra.mxu0 0.0
      %412 = vmatprep.subr.mxu0 0.0
      %413 = vmatpush1.msra.mxu0 0.0
      %414 = vmatprep.subr.mxu0 0.0
      %415 = vmatpush1.msra.mxu0 0.0
      %416 = vmatprep.subr.mxu0 0.0
      %417 = vmatpush1.msra.mxu0 0.0
      %418 = vmatprep.subr.mxu0 0.0
      %419 = vmatpush1.msra.mxu0 0.0
      %420 = vmatprep.subr.mxu0 0.0
      %421 = vmatpush1.msra.mxu0 0.0
      %422 = vmatprep.subr.mxu0 0.0
      %423 = vmatpush1.msra.mxu0 0.0
      %424 = vmatprep.subr.mxu0 0.0
      %425 = vmatpush1.msra.mxu0 0.0
      %426 = vmatprep.subr.mxu0 0.0
      %427 = vmatpush1.msra.mxu0 0.0
      %428 = vmatprep.subr.mxu0 0.0
      %429 = vmatpush1.msra.mxu0 0.0
      %430 = vmatprep.subr.mxu0 0.0
      %431 = vmatpush1.msra.mxu0 0.0
      %432 = vmatprep.mubr.f32.mxu0 0.0
      %v433 = vand.u32 %v285, 4294901760
      %434 = vmatmul.mubr.f32.gmra.mrb[0].mxu0 %v433
      %v435 = vpop.f32.mrb[0].mxu0
      %v436 = vadd.f32 %v360, %v435
      %v437 = vpop.f32.mrb[0].mxu0
      %438 = vdwg.mxu0
      %439 = vmatprep.subr.mxu0 0.0
      %v440 = vand.u32 %v275, 4294901760
      %v441 = vsub.f32 %v275, %v440
      %442 = vmatpush1.msra.mxu0 %v441
      %443 = vmatprep.subr.mxu0 0.0
      %444 = vmatpush1.msra.mxu0 0.0
      %445 = vmatprep.subr.mxu0 0.0
      %446 = vmatpush1.msra.mxu0 0.0
      %447 = vmatprep.subr.mxu0 0.0
      %448 = vmatpush1.msra.mxu0 0.0
      %449 = vmatprep.subr.mxu0 0.0
      %450 = vmatpush1.msra.mxu0 0.0
      %451 = vmatprep.subr.mxu0 0.0
      %452 = vmatpush1.msra.mxu0 0.0
      %453 = vmatprep.subr.mxu0 0.0
      %454 = vmatpush1.msra.mxu0 0.0
      %455 = vmatprep.subr.mxu0 0.0
      %456 = vmatpush1.msra.mxu0 0.0
      %457 = vmatprep.subr.mxu0 0.0
      %458 = vmatpush1.msra.mxu0 0.0
      %459 = vmatprep.subr.mxu0 0.0
      %460 = vmatpush1.msra.mxu0 0.0
      %461 = vmatprep.subr.mxu0 0.0
      %462 = vmatpush1.msra.mxu0 0.0
      %463 = vmatprep.subr.mxu0 0.0
      %464 = vmatpush1.msra.mxu0 0.0
      %465 = vmatprep.subr.mxu0 0.0
      %466 = vmatpush1.msra.mxu0 0.0
      %467 = vmatprep.subr.mxu0 0.0
      %468 = vmatpush1.msra.mxu0 0.0
      %469 = vmatprep.subr.mxu0 0.0
      %470 = vmatpush1.msra.mxu0 0.0
      %471 = vmatprep.subr.mxu0 0.0
      %472 = vmatpush1.msra.mxu0 0.0
      %473 = vmatprep.subr.mxu0 0.0
      %474 = vmatpush1.msra.mxu0 0.0
      %475 = vmatprep.subr.mxu0 0.0
      %476 = vmatpush1.msra.mxu0 0.0
      %477 = vmatprep.subr.mxu0 0.0
      %478 = vmatpush1.msra.mxu0 0.0
      %479 = vmatprep.subr.mxu0 0.0
      %480 = vmatpush1.msra.mxu0 0.0
      %481 = vmatprep.subr.mxu0 0.0
      %482 = vmatpush1.msra.mxu0 0.0
      %483 = vmatprep.subr.mxu0 0.0
      %484 = vmatpush1.msra.mxu0 0.0
      %485 = vmatprep.subr.mxu0 0.0
      %486 = vmatpush1.msra.mxu0 0.0
      %487 = vmatprep.subr.mxu0 0.0
      %488 = vmatpush1.msra.mxu0 0.0
      %489 = vmatprep.subr.mxu0 0.0
      %490 = vmatpush1.msra.mxu0 0.0
      %491 = vmatprep.subr.mxu0 0.0
      %492 = vmatpush1.msra.mxu0 0.0
      %493 = vmatprep.subr.mxu0 0.0
      %494 = vmatpush1.msra.mxu0 0.0
      %495 = vmatprep.subr.mxu0 0.0
      %496 = vmatpush1.msra.mxu0 0.0
      %497 = vmatprep.subr.mxu0 0.0
      %498 = vmatpush1.msra.mxu0 0.0
      %499 = vmatprep.subr.mxu0 0.0
      %500 = vmatpush1.msra.mxu0 0.0
      %501 = vmatprep.subr.mxu0 0.0
      %502 = vmatpush1.msra.mxu0 0.0
      %503 = vmatprep.subr.mxu0 0.0
      %504 = vmatpush1.msra.mxu0 0.0
      %505 = vmatprep.mubr.f32.mxu0 0.0
      %v506 = vand.u32 %v285, 4294901760
      %v507 = vsub.f32 %v285, %v506
      %508 = vmatmul.mubr.f32.gmra.mrb[0].mxu0 %v507
      %v509 = vpop.f32.mrb[0].mxu0
      %v510 = vadd.f32 %v436, %v509
      %v511 = vpop.f32.mrb[0].mxu0
      %512 = vdwg.mxu0
      %513 = vmatprep.subr.mxu0 0.0
      %v514 = vand.u32 %v275, 4294901760
      %515 = vmatpush1.msra.mxu0 %v514
      %516 = vmatprep.subr.mxu0 0.0
      %517 = vmatpush1.msra.mxu0 0.0
      %518 = vmatprep.subr.mxu0 0.0
      %519 = vmatpush1.msra.mxu0 0.0
      %520 = vmatprep.subr.mxu0 0.0
      %521 = vmatpush1.msra.mxu0 0.0
      %522 = vmatprep.subr.mxu0 0.0
      %523 = vmatpush1.msra.mxu0 0.0
      %524 = vmatprep.subr.mxu0 0.0
      %525 = vmatpush1.msra.mxu0 0.0
      %526 = vmatprep.subr.mxu0 0.0
      %527 = vmatpush1.msra.mxu0 0.0
      %528 = vmatprep.subr.mxu0 0.0
      %529 = vmatpush1.msra.mxu0 0.0
      %530 = vmatprep.subr.mxu0 0.0
      %531 = vmatpush1.msra.mxu0 0.0
      %532 = vmatprep.subr.mxu0 0.0
      %533 = vmatpush1.msra.mxu0 0.0
      %534 = vmatprep.subr.mxu0 0.0
      %535 = vmatpush1.msra.mxu0 0.0
      %536 = vmatprep.subr.mxu0 0.0
      %537 = vmatpush1.msra.mxu0 0.0
      %538 = vmatprep.subr.mxu0 0.0
      %539 = vmatpush1.msra.mxu0 0.0
      %540 = vmatprep.subr.mxu0 0.0
      %541 = vmatpush1.msra.mxu0 0.0
      %542 = vmatprep.subr.mxu0 0.0
      %543 = vmatpush1.msra.mxu0 0.0
      %544 = vmatprep.subr.mxu0 0.0
      %545 = vmatpush1.msra.mxu0 0.0
      %546 = vmatprep.subr.mxu0 0.0
      %547 = vmatpush1.msra.mxu0 0.0
      %548 = vmatprep.subr.mxu0 0.0
      %549 = vmatpush1.msra.mxu0 0.0
      %550 = vmatprep.subr.mxu0 0.0
      %551 = vmatpush1.msra.mxu0 0.0
      %552 = vmatprep.subr.mxu0 0.0
      %553 = vmatpush1.msra.mxu0 0.0
      %554 = vmatprep.subr.mxu0 0.0
      %555 = vmatpush1.msra.mxu0 0.0
      %556 = vmatprep.subr.mxu0 0.0
      %557 = vmatpush1.msra.mxu0 0.0
      %558 = vmatprep.subr.mxu0 0.0
      %559 = vmatpush1.msra.mxu0 0.0
      %560 = vmatprep.subr.mxu0 0.0
      %561 = vmatpush1.msra.mxu0 0.0
      %562 = vmatprep.subr.mxu0 0.0
      %563 = vmatpush1.msra.mxu0 0.0
      %564 = vmatprep.subr.mxu0 0.0
      %565 = vmatpush1.msra.mxu0 0.0
      %566 = vmatprep.subr.mxu0 0.0
      %567 = vmatpush1.msra.mxu0 0.0
      %568 = vmatprep.subr.mxu0 0.0
      %569 = vmatpush1.msra.mxu0 0.0
      %570 = vmatprep.subr.mxu0 0.0
      %571 = vmatpush1.msra.mxu0 0.0
      %572 = vmatprep.subr.mxu0 0.0
      %573 = vmatpush1.msra.mxu0 0.0
      %574 = vmatprep.subr.mxu0 0.0
      %575 = vmatpush1.msra.mxu0 0.0
      %576 = vmatprep.subr.mxu0 0.0
      %577 = vmatpush1.msra.mxu0 0.0
      %578 = vmatprep.mubr.f32.mxu0 0.0
      %v579 = vand.u32 %v285, 4294901760
      %v580 = vsub.f32 %v285, %v579
      %v581 = vand.u32 %v580, 4294901760
      %582 = vmatmul.mubr.f32.gmra.mrb[0].mxu0 %v581
      %v583 = vpop.f32.mrb[0].mxu0
      %v584 = vadd.f32 %v510, %v583
      %v585 = vpop.f32.mrb[0].mxu0
      %586 = vdwg.mxu0
      %587 = vmatprep.subr.mxu0 0.0
      %v588 = vand.u32 %v275, 4294901760
      %v589 = vsub.f32 %v275, %v588
      %v590 = vand.u32 %v589, 4294901760
      %591 = vmatpush1.msra.mxu0 %v590
      %592 = vmatprep.subr.mxu0 0.0
      %593 = vmatpush1.msra.mxu0 0.0
      %594 = vmatprep.subr.mxu0 0.0
      %595 = vmatpush1.msra.mxu0 0.0
      %596 = vmatprep.subr.mxu0 0.0
      %597 = vmatpush1.msra.mxu0 0.0
      %598 = vmatprep.subr.mxu0 0.0
      %599 = vmatpush1.msra.mxu0 0.0
      %600 = vmatprep.subr.mxu0 0.0
      %601 = vmatpush1.msra.mxu0 0.0
      %602 = vmatprep.subr.mxu0 0.0
      %603 = vmatpush1.msra.mxu0 0.0
      %604 = vmatprep.subr.mxu0 0.0
      %605 = vmatpush1.msra.mxu0 0.0
      %606 = vmatprep.subr.mxu0 0.0
      %607 = vmatpush1.msra.mxu0 0.0
      %608 = vmatprep.subr.mxu0 0.0
      %609 = vmatpush1.msra.mxu0 0.0
      %610 = vmatprep.subr.mxu0 0.0
      %611 = vmatpush1.msra.mxu0 0.0
      %612 = vmatprep.subr.mxu0 0.0
      %613 = vmatpush1.msra.mxu0 0.0
      %614 = vmatprep.subr.mxu0 0.0
      %615 = vmatpush1.msra.mxu0 0.0
      %616 = vmatprep.subr.mxu0 0.0
      %617 = vmatpush1.msra.mxu0 0.0
      %618 = vmatprep.subr.mxu0 0.0
      %619 = vmatpush1.msra.mxu0 0.0
      %620 = vmatprep.subr.mxu0 0.0
      %621 = vmatpush1.msra.mxu0 0.0
      %622 = vmatprep.subr.mxu0 0.0
      %623 = vmatpush1.msra.mxu0 0.0
      %624 = vmatprep.subr.mxu0 0.0
      %625 = vmatpush1.msra.mxu0 0.0
      %626 = vmatprep.subr.mxu0 0.0
      %627 = vmatpush1.msra.mxu0 0.0
      %628 = vmatprep.subr.mxu0 0.0
      %629 = vmatpush1.msra.mxu0 0.0
      %630 = vmatprep.subr.mxu0 0.0
      %631 = vmatpush1.msra.mxu0 0.0
      %632 = vmatprep.subr.mxu0 0.0
      %633 = vmatpush1.msra.mxu0 0.0
      %634 = vmatprep.subr.mxu0 0.0
      %635 = vmatpush1.msra.mxu0 0.0
      %636 = vmatprep.subr.mxu0 0.0
      %637 = vmatpush1.msra.mxu0 0.0
      %638 = vmatprep.subr.mxu0 0.0
      %639 = vmatpush1.msra.mxu0 0.0
      %640 = vmatprep.subr.mxu0 0.0
      %641 = vmatpush1.msra.mxu0 0.0
      %642 = vmatprep.subr.mxu0 0.0
      %643 = vmatpush1.msra.mxu0 0.0
      %644 = vmatprep.subr.mxu0 0.0
      %645 = vmatpush1.msra.mxu0 0.0
      %646 = vmatprep.subr.mxu0 0.0
      %647 = vmatpush1.msra.mxu0 0.0
      %648 = vmatprep.subr.mxu0 0.0
      %649 = vmatpush1.msra.mxu0 0.0
      %650 = vmatprep.subr.mxu0 0.0
      %651 = vmatpush1.msra.mxu0 0.0
      %652 = vmatprep.subr.mxu0 0.0
      %653 = vmatpush1.msra.mxu0 0.0
      %654 = vmatprep.mubr.f32.mxu0 0.0
      %v655 = vand.u32 %v285, 4294901760
      %656 = vmatmul.mubr.f32.gmra.mrb[0].mxu0 %v655
      %v657 = vpop.f32.mrb[0].mxu0
      %v658 = vadd.f32 %v584, %v657
      %v659 = vpop.f32.mrb[0].mxu0
      %660 = vdwg.mxu0
      %661 = vmatprep.subr.mxu0 0.0
      %v662 = vand.u32 %v275, 4294901760
      %663 = vmatpush1.msra.mxu0 %v662
      %664 = vmatprep.subr.mxu0 0.0
      %665 = vmatpush1.msra.mxu0 0.0
      %666 = vmatprep.subr.mxu0 0.0
      %667 = vmatpush1.msra.mxu0 0.0
      %668 = vmatprep.subr.mxu0 0.0
      %669 = vmatpush1.msra.mxu0 0.0
      %670 = vmatprep.subr.mxu0 0.0
      %671 = vmatpush1.msra.mxu0 0.0
      %672 = vmatprep.subr.mxu0 0.0
      %673 = vmatpush1.msra.mxu0 0.0
      %674 = vmatprep.subr.mxu0 0.0
      %675 = vmatpush1.msra.mxu0 0.0
      %676 = vmatprep.subr.mxu0 0.0
      %677 = vmatpush1.msra.mxu0 0.0
      %678 = vmatprep.subr.mxu0 0.0
      %679 = vmatpush1.msra.mxu0 0.0
      %680 = vmatprep.subr.mxu0 0.0
      %681 = vmatpush1.msra.mxu0 0.0
      %682 = vmatprep.subr.mxu0 0.0
      %683 = vmatpush1.msra.mxu0 0.0
      %684 = vmatprep.subr.mxu0 0.0
      %685 = vmatpush1.msra.mxu0 0.0
      %686 = vmatprep.subr.mxu0 0.0
      %687 = vmatpush1.msra.mxu0 0.0
      %688 = vmatprep.subr.mxu0 0.0
      %689 = vmatpush1.msra.mxu0 0.0
      %690 = vmatprep.subr.mxu0 0.0
      %691 = vmatpush1.msra.mxu0 0.0
      %692 = vmatprep.subr.mxu0 0.0
      %693 = vmatpush1.msra.mxu0 0.0
      %694 = vmatprep.subr.mxu0 0.0
      %695 = vmatpush1.msra.mxu0 0.0
      %696 = vmatprep.subr.mxu0 0.0
      %697 = vmatpush1.msra.mxu0 0.0
      %698 = vmatprep.subr.mxu0 0.0
      %699 = vmatpush1.msra.mxu0 0.0
      %700 = vmatprep.subr.mxu0 0.0
      %701 = vmatpush1.msra.mxu0 0.0
      %702 = vmatprep.subr.mxu0 0.0
      %703 = vmatpush1.msra.mxu0 0.0
      %704 = vmatprep.subr.mxu0 0.0
      %705 = vmatpush1.msra.mxu0 0.0
      %706 = vmatprep.subr.mxu0 0.0
      %707 = vmatpush1.msra.mxu0 0.0
      %708 = vmatprep.subr.mxu0 0.0
      %709 = vmatpush1.msra.mxu0 0.0
      %710 = vmatprep.subr.mxu0 0.0
      %711 = vmatpush1.msra.mxu0 0.0
      %712 = vmatprep.subr.mxu0 0.0
      %713 = vmatpush1.msra.mxu0 0.0
      %714 = vmatprep.subr.mxu0 0.0
      %715 = vmatpush1.msra.mxu0 0.0
      %716 = vmatprep.subr.mxu0 0.0
      %717 = vmatpush1.msra.mxu0 0.0
      %718 = vmatprep.subr.mxu0 0.0
      %719 = vmatpush1.msra.mxu0 0.0
      %720 = vmatprep.subr.mxu0 0.0
      %721 = vmatpush1.msra.mxu0 0.0
      %722 = vmatprep.subr.mxu0 0.0
      %723 = vmatpush1.msra.mxu0 0.0
      %724 = vmatprep.subr.mxu0 0.0
      %725 = vmatpush1.msra.mxu0 0.0
      %726 = vmatprep.mubr.f32.mxu0 0.0
      %v727 = vand.u32 %v285, 4294901760
      %728 = vmatmul.mubr.f32.gmra.mrb[0].mxu0 %v727
      %v729 = vpop.f32.mrb[0].mxu0
      %v730 = vadd.f32 %v658, %v729
      %v731 = vpop.f32.mrb[0].mxu0
      %732 = vdwg.mxu0
      %v733 = vtanh.pop %v730
      %v734 = vld [vmem:[%s3] sm:$0xff]
      %v735 = vld [vmem:[%s3 + $0x8] sm:$0xff]
      %v736 = vld [vmem:[%s3 + $0x10] sm:$0xff]
      %v737 = vld [vmem:[%s3 + $0x18] sm:$0xff]
      %v738 = vld [vmem:[%s4] sm:$0x1]
      %v740 = vlaneseq
      %v741 = vshrl.u32 %v740, 7
      %v742 = vsub.s32 0, %v741
      %v743 = vrot.slane %v738, %v742
      %vm745 = vcmask 261120
      %v747 = vsel %vm745, %v733, 0
      %749 = vmatprep.subr.mxu0 0.0
      %v750 = vand.u32 %v734, 4294901760
      %751 = vmatpush1.msra.mxu0 %v750
      %752 = vmatprep.subr.mxu0 0.0
      %v753 = vand.u32 %v735, 4294901760
      %754 = vmatpush1.msra.mxu0 %v753
      %755 = vmatprep.subr.mxu0 0.0
      %v756 = vand.u32 %v736, 4294901760
      %757 = vmatpush1.msra.mxu0 %v756
      %758 = vmatprep.subr.mxu0 0.0
      %v759 = vand.u32 %v737, 4294901760
      %760 = vmatpush1.msra.mxu0 %v759
      %761 = vmatprep.subr.mxu0 0.0
      %762 = vmatpush1.msra.mxu0 0.0
      %763 = vmatprep.subr.mxu0 0.0
      %764 = vmatpush1.msra.mxu0 0.0
      %765 = vmatprep.subr.mxu0 0.0
      %766 = vmatpush1.msra.mxu0 0.0
      %767 = vmatprep.subr.mxu0 0.0
      %768 = vmatpush1.msra.mxu0 0.0
      %769 = vmatprep.subr.mxu0 0.0
      %770 = vmatpush1.msra.mxu0 0.0
      %771 = vmatprep.subr.mxu0 0.0
      %772 = vmatpush1.msra.mxu0 0.0
      %773 = vmatprep.subr.mxu0 0.0
      %774 = vmatpush1.msra.mxu0 0.0
      %775 = vmatprep.subr.mxu0 0.0
      %776 = vmatpush1.msra.mxu0 0.0
      %777 = vmatprep.subr.mxu0 0.0
      %778 = vmatpush1.msra.mxu0 0.0
      %779 = vmatprep.subr.mxu0 0.0
      %780 = vmatpush1.msra.mxu0 0.0
      %781 = vmatprep.subr.mxu0 0.0
      %782 = vmatpush1.msra.mxu0 0.0
      %783 = vmatprep.subr.mxu0 0.0
      %784 = vmatpush1.msra.mxu0 0.0
      %785 = vmatprep.subr.mxu0 0.0
      %786 = vmatpush1.msra.mxu0 0.0
      %787 = vmatprep.subr.mxu0 0.0
      %788 = vmatpush1.msra.mxu0 0.0
      %789 = vmatprep.subr.mxu0 0.0
      %790 = vmatpush1.msra.mxu0 0.0
      %791 = vmatprep.subr.mxu0 0.0
      %792 = vmatpush1.msra.mxu0 0.0
      %793 = vmatprep.subr.mxu0 0.0
      %794 = vmatpush1.msra.mxu0 0.0
      %795 = vmatprep.subr.mxu0 0.0
      %796 = vmatpush1.msra.mxu0 0.0
      %797 = vmatprep.subr.mxu0 0.0
      %798 = vmatpush1.msra.mxu0 0.0
      %799 = vmatprep.subr.mxu0 0.0
      %800 = vmatpush1.msra.mxu0 0.0
      %801 = vmatprep.subr.mxu0 0.0
      %802 = vmatpush1.msra.mxu0 0.0
      %803 = vmatprep.subr.mxu0 0.0
      %804 = vmatpush1.msra.mxu0 0.0
      %805 = vmatprep.subr.mxu0 0.0
      %806 = vmatpush1.msra.mxu0 0.0
      %807 = vmatprep.subr.mxu0 0.0
      %808 = vmatpush1.msra.mxu0 0.0
      %809 = vmatprep.subr.mxu0 0.0
      %810 = vmatpush1.msra.mxu0 0.0
      %811 = vmatprep.subr.mxu0 0.0
      %812 = vmatpush1.msra.mxu0 0.0
      %813 = vmatprep.subr.mxu0 0.0
      %814 = vmatpush1.msra.mxu0 0.0
      %815 = vmatprep.subr.mxu0 0.0
      %816 = vmatpush1.msra.mxu0 0.0
      %817 = vmatprep.mubr.f32.mxu0 0.0
      %v818 = vand.u32 %v747, 4294901760
      %v819 = vsub.f32 %v747, %v818
      %v820 = vand.u32 %v819, 4294901760
      %v821 = vsub.f32 %v819, %v820
      %v822 = vand.u32 %v821, 4294901760
      %823 = vmatmul.mubr.f32.gmra.mrb[0].mxu0 %v822
      %v824 = vpop.f32.mrb[0].mxu0
      %v825 = vadd.f32 %v743, %v824
      %v826 = vpop.f32.mrb[0].mxu0
      %827 = vdwg.mxu0
      %828 = vmatprep.subr.mxu0 0.0
      %v829 = vand.u32 %v734, 4294901760
      %v830 = vsub.f32 %v734, %v829
      %v831 = vand.u32 %v830, 4294901760
      %v832 = vsub.f32 %v830, %v831
      %v833 = vand.u32 %v832, 4294901760
      %834 = vmatpush1.msra.mxu0 %v833
      %835 = vmatprep.subr.mxu0 0.0
      %v836 = vand.u32 %v735, 4294901760
      %v837 = vsub.f32 %v735, %v836
      %v838 = vand.u32 %v837, 4294901760
      %v839 = vsub.f32 %v837, %v838
      %v840 = vand.u32 %v839, 4294901760
      %841 = vmatpush1.msra.mxu0 %v840
      %842 = vmatprep.subr.mxu0 0.0
      %v843 = vand.u32 %v736, 4294901760
      %v844 = vsub.f32 %v736, %v843
      %v845 = vand.u32 %v844, 4294901760
      %v846 = vsub.f32 %v844, %v845
      %v847 = vand.u32 %v846, 4294901760
      %848 = vmatpush1.msra.mxu0 %v847
      %849 = vmatprep.subr.mxu0 0.0
      %v850 = vand.u32 %v737, 4294901760
      %v851 = vsub.f32 %v737, %v850
      %v852 = vand.u32 %v851, 4294901760
      %v853 = vsub.f32 %v851, %v852
      %v854 = vand.u32 %v853, 4294901760
      %855 = vmatpush1.msra.mxu0 %v854
      %856 = vmatprep.subr.mxu0 0.0
      %857 = vmatpush1.msra.mxu0 0.0
      %858 = vmatprep.subr.mxu0 0.0
      %859 = vmatpush1.msra.mxu0 0.0
      %860 = vmatprep.subr.mxu0 0.0
      %861 = vmatpush1.msra.mxu0 0.0
      %862 = vmatprep.subr.mxu0 0.0
      %863 = vmatpush1.msra.mxu0 0.0
      %864 = vmatprep.subr.mxu0 0.0
      %865 = vmatpush1.msra.mxu0 0.0
      %866 = vmatprep.subr.mxu0 0.0
      %867 = vmatpush1.msra.mxu0 0.0
      %868 = vmatprep.subr.mxu0 0.0
      %869 = vmatpush1.msra.mxu0 0.0
      %870 = vmatprep.subr.mxu0 0.0
      %871 = vmatpush1.msra.mxu0 0.0
      %872 = vmatprep.subr.mxu0 0.0
      %873 = vmatpush1.msra.mxu0 0.0
      %874 = vmatprep.subr.mxu0 0.0
      %875 = vmatpush1.msra.mxu0 0.0
      %876 = vmatprep.subr.mxu0 0.0
      %877 = vmatpush1.msra.mxu0 0.0
      %878 = vmatprep.subr.mxu0 0.0
      %879 = vmatpush1.msra.mxu0 0.0
      %880 = vmatprep.subr.mxu0 0.0
      %881 = vmatpush1.msra.mxu0 0.0
      %882 = vmatprep.subr.mxu0 0.0
      %883 = vmatpush1.msra.mxu0 0.0
      %884 = vmatprep.subr.mxu0 0.0
      %885 = vmatpush1.msra.mxu0 0.0
      %886 = vmatprep.subr.mxu0 0.0
      %887 = vmatpush1.msra.mxu0 0.0
      %888 = vmatprep.subr.mxu0 0.0
      %889 = vmatpush1.msra.mxu0 0.0
      %890 = vmatprep.subr.mxu0 0.0
      %891 = vmatpush1.msra.mxu0 0.0
      %892 = vmatprep.subr.mxu0 0.0
      %893 = vmatpush1.msra.mxu0 0.0
      %894 = vmatprep.subr.mxu0 0.0
      %895 = vmatpush1.msra.mxu0 0.0
      %896 = vmatprep.subr.mxu0 0.0
      %897 = vmatpush1.msra.mxu0 0.0
      %898 = vmatprep.subr.mxu0 0.0
      %899 = vmatpush1.msra.mxu0 0.0
      %900 = vmatprep.subr.mxu0 0.0
      %901 = vmatpush1.msra.mxu0 0.0
      %902 = vmatprep.subr.mxu0 0.0
      %903 = vmatpush1.msra.mxu0 0.0
      %904 = vmatprep.subr.mxu0 0.0
      %905 = vmatpush1.msra.mxu0 0.0
      %906 = vmatprep.subr.mxu0 0.0
      %907 = vmatpush1.msra.mxu0 0.0
      %908 = vmatprep.subr.mxu0 0.0
      %909 = vmatpush1.msra.mxu0 0.0
      %910 = vmatprep.subr.mxu0 0.0
      %911 = vmatpush1.msra.mxu0 0.0
      %912 = vmatprep.mubr.f32.mxu0 0.0
      %v913 = vand.u32 %v747, 4294901760
      %914 = vmatmul.mubr.f32.gmra.mrb[0].mxu0 %v913
      %v915 = vpop.f32.mrb[0].mxu0
      %v916 = vadd.f32 %v825, %v915
      %v917 = vpop.f32.mrb[0].mxu0
      %918 = vdwg.mxu0
      %919 = vmatprep.subr.mxu0 0.0
      %v920 = vand.u32 %v734, 4294901760
      %v921 = vsub.f32 %v734, %v920
      %922 = vmatpush1.msra.mxu0 %v921
      %923 = vmatprep.subr.mxu0 0.0
      %v924 = vand.u32 %v735, 4294901760
      %v925 = vsub.f32 %v735, %v924
      %926 = vmatpush1.msra.mxu0 %v925
      %927 = vmatprep.subr.mxu0 0.0
      %v928 = vand.u32 %v736, 4294901760
      %v929 = vsub.f32 %v736, %v928
      %930 = vmatpush1.msra.mxu0 %v929
      %931 = vmatprep.subr.mxu0 0.0
      %v932 = vand.u32 %v737, 4294901760
      %v933 = vsub.f32 %v737, %v932
      %934 = vmatpush1.msra.mxu0 %v933
      %935 = vmatprep.subr.mxu0 0.0
      %936 = vmatpush1.msra.mxu0 0.0
      %937 = vmatprep.subr.mxu0 0.0
      %938 = vmatpush1.msra.mxu0 0.0
      %939 = vmatprep.subr.mxu0 0.0
      %940 = vmatpush1.msra.mxu0 0.0
      %941 = vmatprep.subr.mxu0 0.0
      %942 = vmatpush1.msra.mxu0 0.0
      %943 = vmatprep.subr.mxu0 0.0
      %944 = vmatpush1.msra.mxu0 0.0
      %945 = vmatprep.subr.mxu0 0.0
      %946 = vmatpush1.msra.mxu0 0.0
      %947 = vmatprep.subr.mxu0 0.0
      %948 = vmatpush1.msra.mxu0 0.0
      %949 = vmatprep.subr.mxu0 0.0
      %950 = vmatpush1.msra.mxu0 0.0
      %951 = vmatprep.subr.mxu0 0.0
      %952 = vmatpush1.msra.mxu0 0.0
      %953 = vmatprep.subr.mxu0 0.0
      %954 = vmatpush1.msra.mxu0 0.0
      %955 = vmatprep.subr.mxu0 0.0
      %956 = vmatpush1.msra.mxu0 0.0
      %957 = vmatprep.subr.mxu0 0.0
      %958 = vmatpush1.msra.mxu0 0.0
      %959 = vmatprep.subr.mxu0 0.0
      %960 = vmatpush1.msra.mxu0 0.0
      %961 = vmatprep.subr.mxu0 0.0
      %962 = vmatpush1.msra.mxu0 0.0
      %963 = vmatprep.subr.mxu0 0.0
      %964 = vmatpush1.msra.mxu0 0.0
      %965 = vmatprep.subr.mxu0 0.0
      %966 = vmatpush1.msra.mxu0 0.0
      %967 = vmatprep.subr.mxu0 0.0
      %968 = vmatpush1.msra.mxu0 0.0
      %969 = vmatprep.subr.mxu0 0.0
      %970 = vmatpush1.msra.mxu0 0.0
      %971 = vmatprep.subr.mxu0 0.0
      %972 = vmatpush1.msra.mxu0 0.0
      %973 = vmatprep.subr.mxu0 0.0
      %974 = vmatpush1.msra.mxu0 0.0
      %975 = vmatprep.subr.mxu0 0.0
      %976 = vmatpush1.msra.mxu0 0.0
      %977 = vmatprep.subr.mxu0 0.0
      %978 = vmatpush1.msra.mxu0 0.0
      %979 = vmatprep.subr.mxu0 0.0
      %980 = vmatpush1.msra.mxu0 0.0
      %981 = vmatprep.subr.mxu0 0.0
      %982 = vmatpush1.msra.mxu0 0.0
      %983 = vmatprep.subr.mxu0 0.0
      %984 = vmatpush1.msra.mxu0 0.0
      %985 = vmatprep.subr.mxu0 0.0
      %986 = vmatpush1.msra.mxu0 0.0
      %987 = vmatprep.subr.mxu0 0.0
      %988 = vmatpush1.msra.mxu0 0.0
      %989 = vmatprep.subr.mxu0 0.0
      %990 = vmatpush1.msra.mxu0 0.0
      %991 = vmatprep.mubr.f32.mxu0 0.0
      %v992 = vand.u32 %v747, 4294901760
      %v993 = vsub.f32 %v747, %v992
      %994 = vmatmul.mubr.f32.gmra.mrb[0].mxu0 %v993
      %v995 = vpop.f32.mrb[0].mxu0
      %v996 = vadd.f32 %v916, %v995
      %v997 = vpop.f32.mrb[0].mxu0
      %998 = vdwg.mxu0
      %999 = vmatprep.subr.mxu0 0.0
      %v1000 = vand.u32 %v734, 4294901760
      %1001 = vmatpush1.msra.mxu0 %v1000
      %1002 = vmatprep.subr.mxu0 0.0
      %v1003 = vand.u32 %v735, 4294901760
      %1004 = vmatpush1.msra.mxu0 %v1003
      %1005 = vmatprep.subr.mxu0 0.0
      %v1006 = vand.u32 %v736, 4294901760
      %1007 = vmatpush1.msra.mxu0 %v1006
      %1008 = vmatprep.subr.mxu0 0.0
      %v1009 = vand.u32 %v737, 4294901760
      %1010 = vmatpush1.msra.mxu0 %v1009
      %1011 = vmatprep.subr.mxu0 0.0
      %1012 = vmatpush1.msra.mxu0 0.0
      %1013 = vmatprep.subr.mxu0 0.0
      %1014 = vmatpush1.msra.mxu0 0.0
      %1015 = vmatprep.subr.mxu0 0.0
      %1016 = vmatpush1.msra.mxu0 0.0
      %1017 = vmatprep.subr.mxu0 0.0
      %1018 = vmatpush1.msra.mxu0 0.0
      %1019 = vmatprep.subr.mxu0 0.0
      %1020 = vmatpush1.msra.mxu0 0.0
      %1021 = vmatprep.subr.mxu0 0.0
      %1022 = vmatpush1.msra.mxu0 0.0
      %1023 = vmatprep.subr.mxu0 0.0
      %1024 = vmatpush1.msra.mxu0 0.0
      %1025 = vmatprep.subr.mxu0 0.0
      %1026 = vmatpush1.msra.mxu0 0.0
      %1027 = vmatprep.subr.mxu0 0.0
      %1028 = vmatpush1.msra.mxu0 0.0
      %1029 = vmatprep.subr.mxu0 0.0
      %1030 = vmatpush1.msra.mxu0 0.0
      %1031 = vmatprep.subr.mxu0 0.0
      %1032 = vmatpush1.msra.mxu0 0.0
      %1033 = vmatprep.subr.mxu0 0.0
      %1034 = vmatpush1.msra.mxu0 0.0
      %1035 = vmatprep.subr.mxu0 0.0
      %1036 = vmatpush1.msra.mxu0 0.0
      %1037 = vmatprep.subr.mxu0 0.0
      %1038 = vmatpush1.msra.mxu0 0.0
      %1039 = vmatprep.subr.mxu0 0.0
      %1040 = vmatpush1.msra.mxu0 0.0
      %1041 = vmatprep.subr.mxu0 0.0
      %1042 = vmatpush1.msra.mxu0 0.0
      %1043 = vmatprep.subr.mxu0 0.0
      %1044 = vmatpush1.msra.mxu0 0.0
      %1045 = vmatprep.subr.mxu0 0.0
      %1046 = vmatpush1.msra.mxu0 0.0
      %1047 = vmatprep.subr.mxu0 0.0
      %1048 = vmatpush1.msra.mxu0 0.0
      %1049 = vmatprep.subr.mxu0 0.0
      %1050 = vmatpush1.msra.mxu0 0.0
      %1051 = vmatprep.subr.mxu0 0.0
      %1052 = vmatpush1.msra.mxu0 0.0
      %1053 = vmatprep.subr.mxu0 0.0
      %1054 = vmatpush1.msra.mxu0 0.0
      %1055 = vmatprep.subr.mxu0 0.0
      %1056 = vmatpush1.msra.mxu0 0.0
      %1057 = vmatprep.subr.mxu0 0.0
      %1058 = vmatpush1.msra.mxu0 0.0
      %1059 = vmatprep.subr.mxu0 0.0
      %1060 = vmatpush1.msra.mxu0 0.0
      %1061 = vmatprep.subr.mxu0 0.0
      %1062 = vmatpush1.msra.mxu0 0.0
      %1063 = vmatprep.subr.mxu0 0.0
      %1064 = vmatpush1.msra.mxu0 0.0
      %1065 = vmatprep.subr.mxu0 0.0
      %1066 = vmatpush1.msra.mxu0 0.0
      %1067 = vmatprep.mubr.f32.mxu0 0.0
      %v1068 = vand.u32 %v747, 4294901760
      %v1069 = vsub.f32 %v747, %v1068
      %v1070 = vand.u32 %v1069, 4294901760
      %1071 = vmatmul.mubr.f32.gmra.mrb[0].mxu0 %v1070
      %v1072 = vpop.f32.mrb[0].mxu0
      %v1073 = vadd.f32 %v996, %v1072
      %v1074 = vpop.f32.mrb[0].mxu0
      %1075 = vdwg.mxu0
      %1076 = vmatprep.subr.mxu0 0.0
      %v1077 = vand.u32 %v734, 4294901760
      %v1078 = vsub.f32 %v734, %v1077
      %v1079 = vand.u32 %v1078, 4294901760
      %1080 = vmatpush1.msra.mxu0 %v1079
      %1081 = vmatprep.subr.mxu0 0.0
      %v1082 = vand.u32 %v735, 4294901760
      %v1083 = vsub.f32 %v735, %v1082
      %v1084 = vand.u32 %v1083, 4294901760
      %1085 = vmatpush1.msra.mxu0 %v1084
      %1086 = vmatprep.subr.mxu0 0.0
      %v1087 = vand.u32 %v736, 4294901760
      %v1088 = vsub.f32 %v736, %v1087
      %v1089 = vand.u32 %v1088, 4294901760
      %1090 = vmatpush1.msra.mxu0 %v1089
      %1091 = vmatprep.subr.mxu0 0.0
      %v1092 = vand.u32 %v737, 4294901760
      %v1093 = vsub.f32 %v737, %v1092
      %v1094 = vand.u32 %v1093, 4294901760
      %1095 = vmatpush1.msra.mxu0 %v1094
      %1096 = vmatprep.subr.mxu0 0.0
      %1097 = vmatpush1.msra.mxu0 0.0
      %1098 = vmatprep.subr.mxu0 0.0
      %1099 = vmatpush1.msra.mxu0 0.0
      %1100 = vmatprep.subr.mxu0 0.0
      %1101 = vmatpush1.msra.mxu0 0.0
      %1102 = vmatprep.subr.mxu0 0.0
      %1103 = vmatpush1.msra.mxu0 0.0
      %1104 = vmatprep.subr.mxu0 0.0
      %1105 = vmatpush1.msra.mxu0 0.0
      %1106 = vmatprep.subr.mxu0 0.0
      %1107 = vmatpush1.msra.mxu0 0.0
      %1108 = vmatprep.subr.mxu0 0.0
      %1109 = vmatpush1.msra.mxu0 0.0
      %1110 = vmatprep.subr.mxu0 0.0
      %1111 = vmatpush1.msra.mxu0 0.0
      %1112 = vmatprep.subr.mxu0 0.0
      %1113 = vmatpush1.msra.mxu0 0.0
      %1114 = vmatprep.subr.mxu0 0.0
      %1115 = vmatpush1.msra.mxu0 0.0
      %1116 = vmatprep.subr.mxu0 0.0
      %1117 = vmatpush1.msra.mxu0 0.0
      %1118 = vmatprep.subr.mxu0 0.0
      %1119 = vmatpush1.msra.mxu0 0.0
      %1120 = vmatprep.subr.mxu0 0.0
      %1121 = vmatpush1.msra.mxu0 0.0
      %1122 = vmatprep.subr.mxu0 0.0
      %1123 = vmatpush1.msra.mxu0 0.0
      %1124 = vmatprep.subr.mxu0 0.0
      %1125 = vmatpush1.msra.mxu0 0.0
      %1126 = vmatprep.subr.mxu0 0.0
      %1127 = vmatpush1.msra.mxu0 0.0
      %1128 = vmatprep.subr.mxu0 0.0
      %1129 = vmatpush1.msra.mxu0 0.0
      %1130 = vmatprep.subr.mxu0 0.0
      %1131 = vmatpush1.msra.mxu0 0.0
      %1132 = vmatprep.subr.mxu0 0.0
      %1133 = vmatpush1.msra.mxu0 0.0
      %1134 = vmatprep.subr.mxu0 0.0
      %1135 = vmatpush1.msra.mxu0 0.0
      %1136 = vmatprep.subr.mxu0 0.0
      %1137 = vmatpush1.msra.mxu0 0.0
      %1138 = vmatprep.subr.mxu0 0.0
      %1139 = vmatpush1.msra.mxu0 0.0
      %1140 = vmatprep.subr.mxu0 0.0
      %1141 = vmatpush1.msra.mxu0 0.0
      %1142 = vmatprep.subr.mxu0 0.0
      %1143 = vmatpush1.msra.mxu0 0.0
      %1144 = vmatprep.subr.mxu0 0.0
      %1145 = vmatpush1.msra.mxu0 0.0
      %1146 = vmatprep.subr.mxu0 0.0
      %1147 = vmatpush1.msra.mxu0 0.0
      %1148 = vmatprep.subr.mxu0 0.0
      %1149 = vmatpush1.msra.mxu0 0.0
      %1150 = vmatprep.subr.mxu0 0.0
      %1151 = vmatpush1.msra.mxu0 0.0
      %1152 = vmatprep.mubr.f32.mxu0 0.0
      %v1153 = vand.u32 %v747, 4294901760
      %1154 = vmatmul.mubr.f32.gmra.mrb[0].mxu0 %v1153
      %v1155 = vpop.f32.mrb[0].mxu0
      %v1156 = vadd.f32 %v1073, %v1155
      %v1157 = vpop.f32.mrb[0].mxu0
      %1158 = vdwg.mxu0
      %1159 = vmatprep.subr.mxu0 0.0
      %v1160 = vand.u32 %v734, 4294901760
      %1161 = vmatpush1.msra.mxu0 %v1160
      %1162 = vmatprep.subr.mxu0 0.0
      %v1163 = vand.u32 %v735, 4294901760
      %1164 = vmatpush1.msra.mxu0 %v1163
      %1165 = vmatprep.subr.mxu0 0.0
      %v1166 = vand.u32 %v736, 4294901760
      %1167 = vmatpush1.msra.mxu0 %v1166
      %1168 = vmatprep.subr.mxu0 0.0
      %v1169 = vand.u32 %v737, 4294901760
      %1170 = vmatpush1.msra.mxu0 %v1169
      %1171 = vmatprep.subr.mxu0 0.0
      %1172 = vmatpush1.msra.mxu0 0.0
      %1173 = vmatprep.subr.mxu0 0.0
      %1174 = vmatpush1.msra.mxu0 0.0
      %1175 = vmatprep.subr.mxu0 0.0
      %1176 = vmatpush1.msra.mxu0 0.0
      %1177 = vmatprep.subr.mxu0 0.0
      %1178 = vmatpush1.msra.mxu0 0.0
      %1179 = vmatprep.subr.mxu0 0.0
      %1180 = vmatpush1.msra.mxu0 0.0
      %1181 = vmatprep.subr.mxu0 0.0
      %1182 = vmatpush1.msra.mxu0 0.0
      %1183 = vmatprep.subr.mxu0 0.0
      %1184 = vmatpush1.msra.mxu0 0.0
      %1185 = vmatprep.subr.mxu0 0.0
      %1186 = vmatpush1.msra.mxu0 0.0
      %1187 = vmatprep.subr.mxu0 0.0
      %1188 = vmatpush1.msra.mxu0 0.0
      %1189 = vmatprep.subr.mxu0 0.0
      %1190 = vmatpush1.msra.mxu0 0.0
      %1191 = vmatprep.subr.mxu0 0.0
      %1192 = vmatpush1.msra.mxu0 0.0
      %1193 = vmatprep.subr.mxu0 0.0
      %1194 = vmatpush1.msra.mxu0 0.0
      %1195 = vmatprep.subr.mxu0 0.0
      %1196 = vmatpush1.msra.mxu0 0.0
      %1197 = vmatprep.subr.mxu0 0.0
      %1198 = vmatpush1.msra.mxu0 0.0
      %1199 = vmatprep.subr.mxu0 0.0
      %1200 = vmatpush1.msra.mxu0 0.0
      %1201 = vmatprep.subr.mxu0 0.0
      %1202 = vmatpush1.msra.mxu0 0.0
      %1203 = vmatprep.subr.mxu0 0.0
      %1204 = vmatpush1.msra.mxu0 0.0
      %1205 = vmatprep.subr.mxu0 0.0
      %1206 = vmatpush1.msra.mxu0 0.0
      %1207 = vmatprep.subr.mxu0 0.0
      %1208 = vmatpush1.msra.mxu0 0.0
      %1209 = vmatprep.subr.mxu0 0.0
      %1210 = vmatpush1.msra.mxu0 0.0
      %1211 = vmatprep.subr.mxu0 0.0
      %1212 = vmatpush1.msra.mxu0 0.0
      %1213 = vmatprep.subr.mxu0 0.0
      %1214 = vmatpush1.msra.mxu0 0.0
      %1215 = vmatprep.subr.mxu0 0.0
      %1216 = vmatpush1.msra.mxu0 0.0
      %1217 = vmatprep.subr.mxu0 0.0
      %1218 = vmatpush1.msra.mxu0 0.0
      %1219 = vmatprep.subr.mxu0 0.0
      %1220 = vmatpush1.msra.mxu0 0.0
      %1221 = vmatprep.subr.mxu0 0.0
      %1222 = vmatpush1.msra.mxu0 0.0
      %1223 = vmatprep.subr.mxu0 0.0
      %1224 = vmatpush1.msra.mxu0 0.0
      %1225 = vmatprep.subr.mxu0 0.0
      %1226 = vmatpush1.msra.mxu0 0.0
      %1227 = vmatprep.mubr.f32.mxu0 0.0
      %v1228 = vand.u32 %v747, 4294901760
      %1229 = vmatmul.mubr.f32.gmra.mrb[0].mxu0 %v1228
      %v1230 = vpop.f32.mrb[0].mxu0
      %v1231 = vadd.f32 %v1156, %v1230
      %v1232 = vpop.f32.mrb[0].mxu0
      %1233 = vdwg.mxu0
      %v1234 = vtanh.pop %v1231
      %v1235 = vld [vmem:[%s5] sm:$0xff]
      %v1236 = vld [vmem:[%s5 + $0x8] sm:$0xff]
      %v1237 = vld [vmem:[%s5 + $0x10] sm:$0xff]
      %v1238 = vld [vmem:[%s5 + $0x18] sm:$0xff]
      %v1239 = vld [vmem:[%s6] sm:$0x1]
      %v1241 = vlaneseq
      %v1242 = vshrl.u32 %v1241, 7
      %v1243 = vsub.s32 0, %v1242
      %v1244 = vrot.slane %v1239, %v1243
      %v1247 = vsel %vm745, %v1234, 0
      %1249 = vmatprep.subr.mxu0 0.0
      %v1250 = vand.u32 %v1235, 4294901760
      %1251 = vmatpush1.msra.mxu0 %v1250
      %1252 = vmatprep.subr.mxu0 0.0
      %v1253 = vand.u32 %v1236, 4294901760
      %1254 = vmatpush1.msra.mxu0 %v1253
      %1255 = vmatprep.subr.mxu0 0.0
      %v1256 = vand.u32 %v1237, 4294901760
      %1257 = vmatpush1.msra.mxu0 %v1256
      %1258 = vmatprep.subr.mxu0 0.0
      %v1259 = vand.u32 %v1238, 4294901760
      %1260 = vmatpush1.msra.mxu0 %v1259
      %1261 = vmatprep.subr.mxu0 0.0
      %1262 = vmatpush1.msra.mxu0 0.0
      %1263 = vmatprep.subr.mxu0 0.0
      %1264 = vmatpush1.msra.mxu0 0.0
      %1265 = vmatprep.subr.mxu0 0.0
      %1266 = vmatpush1.msra.mxu0 0.0
      %1267 = vmatprep.subr.mxu0 0.0
      %1268 = vmatpush1.msra.mxu0 0.0
      %1269 = vmatprep.subr.mxu0 0.0
      %1270 = vmatpush1.msra.mxu0 0.0
      %1271 = vmatprep.subr.mxu0 0.0
      %1272 = vmatpush1.msra.mxu0 0.0
      %1273 = vmatprep.subr.mxu0 0.0
      %1274 = vmatpush1.msra.mxu0 0.0
      %1275 = vmatprep.subr.mxu0 0.0
      %1276 = vmatpush1.msra.mxu0 0.0
      %1277 = vmatprep.subr.mxu0 0.0
      %1278 = vmatpush1.msra.mxu0 0.0
      %1279 = vmatprep.subr.mxu0 0.0
      %1280 = vmatpush1.msra.mxu0 0.0
      %1281 = vmatprep.subr.mxu0 0.0
      %1282 = vmatpush1.msra.mxu0 0.0
      %1283 = vmatprep.subr.mxu0 0.0
      %1284 = vmatpush1.msra.mxu0 0.0
      %1285 = vmatprep.subr.mxu0 0.0
      %1286 = vmatpush1.msra.mxu0 0.0
      %1287 = vmatprep.subr.mxu0 0.0
      %1288 = vmatpush1.msra.mxu0 0.0
      %1289 = vmatprep.subr.mxu0 0.0
      %1290 = vmatpush1.msra.mxu0 0.0
      %1291 = vmatprep.subr.mxu0 0.0
      %1292 = vmatpush1.msra.mxu0 0.0
      %1293 = vmatprep.subr.mxu0 0.0
      %1294 = vmatpush1.msra.mxu0 0.0
      %1295 = vmatprep.subr.mxu0 0.0
      %1296 = vmatpush1.msra.mxu0 0.0
      %1297 = vmatprep.subr.mxu0 0.0
      %1298 = vmatpush1.msra.mxu0 0.0
      %1299 = vmatprep.subr.mxu0 0.0
      %1300 = vmatpush1.msra.mxu0 0.0
      %1301 = vmatprep.subr.mxu0 0.0
      %1302 = vmatpush1.msra.mxu0 0.0
      %1303 = vmatprep.subr.mxu0 0.0
      %1304 = vmatpush1.msra.mxu0 0.0
      %1305 = vmatprep.subr.mxu0 0.0
      %1306 = vmatpush1.msra.mxu0 0.0
      %1307 = vmatprep.subr.mxu0 0.0
      %1308 = vmatpush1.msra.mxu0 0.0
      %1309 = vmatprep.subr.mxu0 0.0
      %1310 = vmatpush1.msra.mxu0 0.0
      %1311 = vmatprep.subr.mxu0 0.0
      %1312 = vmatpush1.msra.mxu0 0.0
      %1313 = vmatprep.subr.mxu0 0.0
      %1314 = vmatpush1.msra.mxu0 0.0
      %1315 = vmatprep.subr.mxu0 0.0
      %1316 = vmatpush1.msra.mxu0 0.0
      %1317 = vmatprep.mubr.f32.mxu0 0.0
      %v1318 = vand.u32 %v1247, 4294901760
      %v1319 = vsub.f32 %v1247, %v1318
      %v1320 = vand.u32 %v1319, 4294901760
      %v1321 = vsub.f32 %v1319, %v1320
      %v1322 = vand.u32 %v1321, 4294901760
      %1323 = vmatmul.mubr.f32.gmra.mrb[0].mxu0 %v1322
      %v1324 = vpop.f32.mrb[0].mxu0
      %v1325 = vadd.f32 %v1244, %v1324
      %v1326 = vpop.f32.mrb[0].mxu0
      %1327 = vdwg.mxu0
      %1328 = vmatprep.subr.mxu0 0.0
      %v1329 = vand.u32 %v1235, 4294901760
      %v1330 = vsub.f32 %v1235, %v1329
      %v1331 = vand.u32 %v1330, 4294901760
      %v1332 = vsub.f32 %v1330, %v1331
      %v1333 = vand.u32 %v1332, 4294901760
      %1334 = vmatpush1.msra.mxu0 %v1333
      %1335 = vmatprep.subr.mxu0 0.0
      %v1336 = vand.u32 %v1236, 4294901760
      %v1337 = vsub.f32 %v1236, %v1336
      %v1338 = vand.u32 %v1337, 4294901760
      %v1339 = vsub.f32 %v1337, %v1338
      %v1340 = vand.u32 %v1339, 4294901760
      %1341 = vmatpush1.msra.mxu0 %v1340
      %1342 = vmatprep.subr.mxu0 0.0
      %v1343 = vand.u32 %v1237, 4294901760
      %v1344 = vsub.f32 %v1237, %v1343
      %v1345 = vand.u32 %v1344, 4294901760
      %v1346 = vsub.f32 %v1344, %v1345
      %v1347 = vand.u32 %v1346, 4294901760
      %1348 = vmatpush1.msra.mxu0 %v1347
      %1349 = vmatprep.subr.mxu0 0.0
      %v1350 = vand.u32 %v1238, 4294901760
      %v1351 = vsub.f32 %v1238, %v1350
      %v1352 = vand.u32 %v1351, 4294901760
      %v1353 = vsub.f32 %v1351, %v1352
      %v1354 = vand.u32 %v1353, 4294901760
      %1355 = vmatpush1.msra.mxu0 %v1354
      %1356 = vmatprep.subr.mxu0 0.0
      %1357 = vmatpush1.msra.mxu0 0.0
      %1358 = vmatprep.subr.mxu0 0.0
      %1359 = vmatpush1.msra.mxu0 0.0
      %1360 = vmatprep.subr.mxu0 0.0
      %1361 = vmatpush1.msra.mxu0 0.0
      %1362 = vmatprep.subr.mxu0 0.0
      %1363 = vmatpush1.msra.mxu0 0.0
      %1364 = vmatprep.subr.mxu0 0.0
      %1365 = vmatpush1.msra.mxu0 0.0
      %1366 = vmatprep.subr.mxu0 0.0
      %1367 = vmatpush1.msra.mxu0 0.0
      %1368 = vmatprep.subr.mxu0 0.0
      %1369 = vmatpush1.msra.mxu0 0.0
      %1370 = vmatprep.subr.mxu0 0.0
      %1371 = vmatpush1.msra.mxu0 0.0
      %1372 = vmatprep.subr.mxu0 0.0
      %1373 = vmatpush1.msra.mxu0 0.0
      %1374 = vmatprep.subr.mxu0 0.0
      %1375 = vmatpush1.msra.mxu0 0.0
      %1376 = vmatprep.subr.mxu0 0.0
      %1377 = vmatpush1.msra.mxu0 0.0
      %1378 = vmatprep.subr.mxu0 0.0
      %1379 = vmatpush1.msra.mxu0 0.0
      %1380 = vmatprep.subr.mxu0 0.0
      %1381 = vmatpush1.msra.mxu0 0.0
      %1382 = vmatprep.subr.mxu0 0.0
      %1383 = vmatpush1.msra.mxu0 0.0
      %1384 = vmatprep.subr.mxu0 0.0
      %1385 = vmatpush1.msra.mxu0 0.0
      %1386 = vmatprep.subr.mxu0 0.0
      %1387 = vmatpush1.msra.mxu0 0.0
      %1388 = vmatprep.subr.mxu0 0.0
      %1389 = vmatpush1.msra.mxu0 0.0
      %1390 = vmatprep.subr.mxu0 0.0
      %1391 = vmatpush1.msra.mxu0 0.0
      %1392 = vmatprep.subr.mxu0 0.0
      %1393 = vmatpush1.msra.mxu0 0.0
      %1394 = vmatprep.subr.mxu0 0.0
      %1395 = vmatpush1.msra.mxu0 0.0
      %1396 = vmatprep.subr.mxu0 0.0
      %1397 = vmatpush1.msra.mxu0 0.0
      %1398 = vmatprep.subr.mxu0 0.0
      %1399 = vmatpush1.msra.mxu0 0.0
      %1400 = vmatprep.subr.mxu0 0.0
      %1401 = vmatpush1.msra.mxu0 0.0
      %1402 = vmatprep.subr.mxu0 0.0
      %1403 = vmatpush1.msra.mxu0 0.0
      %1404 = vmatprep.subr.mxu0 0.0
      %1405 = vmatpush1.msra.mxu0 0.0
      %1406 = vmatprep.subr.mxu0 0.0
      %1407 = vmatpush1.msra.mxu0 0.0
      %1408 = vmatprep.subr.mxu0 0.0
      %1409 = vmatpush1.msra.mxu0 0.0
      %1410 = vmatprep.subr.mxu0 0.0
      %1411 = vmatpush1.msra.mxu0 0.0
      %1412 = vmatprep.mubr.f32.mxu0 0.0
      %v1413 = vand.u32 %v1247, 4294901760
      %1414 = vmatmul.mubr.f32.gmra.mrb[0].mxu0 %v1413
      %v1415 = vpop.f32.mrb[0].mxu0
      %v1416 = vadd.f32 %v1325, %v1415
      %v1417 = vpop.f32.mrb[0].mxu0
      %1418 = vdwg.mxu0
      %1419 = vmatprep.subr.mxu0 0.0
      %v1420 = vand.u32 %v1235, 4294901760
      %v1421 = vsub.f32 %v1235, %v1420
      %1422 = vmatpush1.msra.mxu0 %v1421
      %1423 = vmatprep.subr.mxu0 0.0
      %v1424 = vand.u32 %v1236, 4294901760
      %v1425 = vsub.f32 %v1236, %v1424
      %1426 = vmatpush1.msra.mxu0 %v1425
      %1427 = vmatprep.subr.mxu0 0.0
      %v1428 = vand.u32 %v1237, 4294901760
      %v1429 = vsub.f32 %v1237, %v1428
      %1430 = vmatpush1.msra.mxu0 %v1429
      %1431 = vmatprep.subr.mxu0 0.0
      %v1432 = vand.u32 %v1238, 4294901760
      %v1433 = vsub.f32 %v1238, %v1432
      %1434 = vmatpush1.msra.mxu0 %v1433
      %1435 = vmatprep.subr.mxu0 0.0
      %1436 = vmatpush1.msra.mxu0 0.0
      %1437 = vmatprep.subr.mxu0 0.0
      %1438 = vmatpush1.msra.mxu0 0.0
      %1439 = vmatprep.subr.mxu0 0.0
      %1440 = vmatpush1.msra.mxu0 0.0
      %1441 = vmatprep.subr.mxu0 0.0
      %1442 = vmatpush1.msra.mxu0 0.0
      %1443 = vmatprep.subr.mxu0 0.0
      %1444 = vmatpush1.msra.mxu0 0.0
      %1445 = vmatprep.subr.mxu0 0.0
      %1446 = vmatpush1.msra.mxu0 0.0
      %1447 = vmatprep.subr.mxu0 0.0
      %1448 = vmatpush1.msra.mxu0 0.0
      %1449 = vmatprep.subr.mxu0 0.0
      %1450 = vmatpush1.msra.mxu0 0.0
      %1451 = vmatprep.subr.mxu0 0.0
      %1452 = vmatpush1.msra.mxu0 0.0
      %1453 = vmatprep.subr.mxu0 0.0
      %1454 = vmatpush1.msra.mxu0 0.0
      %1455 = vmatprep.subr.mxu0 0.0
      %1456 = vmatpush1.msra.mxu0 0.0
      %1457 = vmatprep.subr.mxu0 0.0
      %1458 = vmatpush1.msra.mxu0 0.0
      %1459 = vmatprep.subr.mxu0 0.0
      %1460 = vmatpush1.msra.mxu0 0.0
      %1461 = vmatprep.subr.mxu0 0.0
      %1462 = vmatpush1.msra.mxu0 0.0
      %1463 = vmatprep.subr.mxu0 0.0
      %1464 = vmatpush1.msra.mxu0 0.0
      %1465 = vmatprep.subr.mxu0 0.0
      %1466 = vmatpush1.msra.mxu0 0.0
      %1467 = vmatprep.subr.mxu0 0.0
      %1468 = vmatpush1.msra.mxu0 0.0
      %1469 = vmatprep.subr.mxu0 0.0
      %1470 = vmatpush1.msra.mxu0 0.0
      %1471 = vmatprep.subr.mxu0 0.0
      %1472 = vmatpush1.msra.mxu0 0.0
      %1473 = vmatprep.subr.mxu0 0.0
      %1474 = vmatpush1.msra.mxu0 0.0
      %1475 = vmatprep.subr.mxu0 0.0
      %1476 = vmatpush1.msra.mxu0 0.0
      %1477 = vmatprep.subr.mxu0 0.0
      %1478 = vmatpush1.msra.mxu0 0.0
      %1479 = vmatprep.subr.mxu0 0.0
      %1480 = vmatpush1.msra.mxu0 0.0
      %1481 = vmatprep.subr.mxu0 0.0
      %1482 = vmatpush1.msra.mxu0 0.0
      %1483 = vmatprep.subr.mxu0 0.0
      %1484 = vmatpush1.msra.mxu0 0.0
      %1485 = vmatprep.subr.mxu0 0.0
      %1486 = vmatpush1.msra.mxu0 0.0
      %1487 = vmatprep.subr.mxu0 0.0
      %1488 = vmatpush1.msra.mxu0 0.0
      %1489 = vmatprep.subr.mxu0 0.0
      %1490 = vmatpush1.msra.mxu0 0.0
      %1491 = vmatprep.mubr.f32.mxu0 0.0
      %v1492 = vand.u32 %v1247, 4294901760
      %v1493 = vsub.f32 %v1247, %v1492
      %1494 = vmatmul.mubr.f32.gmra.mrb[0].mxu0 %v1493
      %v1495 = vpop.f32.mrb[0].mxu0
      %v1496 = vadd.f32 %v1416, %v1495
      %v1497 = vpop.f32.mrb[0].mxu0
      %1498 = vdwg.mxu0
      %1499 = vmatprep.subr.mxu0 0.0
      %v1500 = vand.u32 %v1235, 4294901760
      %1501 = vmatpush1.msra.mxu0 %v1500
      %1502 = vmatprep.subr.mxu0 0.0
      %v1503 = vand.u32 %v1236, 4294901760
      %1504 = vmatpush1.msra.mxu0 %v1503
      %1505 = vmatprep.subr.mxu0 0.0
      %v1506 = vand.u32 %v1237, 4294901760
      %1507 = vmatpush1.msra.mxu0 %v1506
      %1508 = vmatprep.subr.mxu0 0.0
      %v1509 = vand.u32 %v1238, 4294901760
      %1510 = vmatpush1.msra.mxu0 %v1509
      %1511 = vmatprep.subr.mxu0 0.0
      %1512 = vmatpush1.msra.mxu0 0.0
      %1513 = vmatprep.subr.mxu0 0.0
      %1514 = vmatpush1.msra.mxu0 0.0
      %1515 = vmatprep.subr.mxu0 0.0
      %1516 = vmatpush1.msra.mxu0 0.0
      %1517 = vmatprep.subr.mxu0 0.0
      %1518 = vmatpush1.msra.mxu0 0.0
      %1519 = vmatprep.subr.mxu0 0.0
      %1520 = vmatpush1.msra.mxu0 0.0
      %1521 = vmatprep.subr.mxu0 0.0
      %1522 = vmatpush1.msra.mxu0 0.0
      %1523 = vmatprep.subr.mxu0 0.0
      %1524 = vmatpush1.msra.mxu0 0.0
      %1525 = vmatprep.subr.mxu0 0.0
      %1526 = vmatpush1.msra.mxu0 0.0
      %1527 = vmatprep.subr.mxu0 0.0
      %1528 = vmatpush1.msra.mxu0 0.0
      %1529 = vmatprep.subr.mxu0 0.0
      %1530 = vmatpush1.msra.mxu0 0.0
      %1531 = vmatprep.subr.mxu0 0.0
      %1532 = vmatpush1.msra.mxu0 0.0
      %1533 = vmatprep.subr.mxu0 0.0
      %1534 = vmatpush1.msra.mxu0 0.0
      %1535 = vmatprep.subr.mxu0 0.0
      %1536 = vmatpush1.msra.mxu0 0.0
      %1537 = vmatprep.subr.mxu0 0.0
      %1538 = vmatpush1.msra.mxu0 0.0
      %1539 = vmatprep.subr.mxu0 0.0
      %1540 = vmatpush1.msra.mxu0 0.0
      %1541 = vmatprep.subr.mxu0 0.0
      %1542 = vmatpush1.msra.mxu0 0.0
      %1543 = vmatprep.subr.mxu0 0.0
      %1544 = vmatpush1.msra.mxu0 0.0
      %1545 = vmatprep.subr.mxu0 0.0
      %1546 = vmatpush1.msra.mxu0 0.0
      %1547 = vmatprep.subr.mxu0 0.0
      %1548 = vmatpush1.msra.mxu0 0.0
      %1549 = vmatprep.subr.mxu0 0.0
      %1550 = vmatpush1.msra.mxu0 0.0
      %1551 = vmatprep.subr.mxu0 0.0
      %1552 = vmatpush1.msra.mxu0 0.0
      %1553 = vmatprep.subr.mxu0 0.0
      %1554 = vmatpush1.msra.mxu0 0.0
      %1555 = vmatprep.subr.mxu0 0.0
      %1556 = vmatpush1.msra.mxu0 0.0
      %1557 = vmatprep.subr.mxu0 0.0
      %1558 = vmatpush1.msra.mxu0 0.0
      %1559 = vmatprep.subr.mxu0 0.0
      %1560 = vmatpush1.msra.mxu0 0.0
      %1561 = vmatprep.subr.mxu0 0.0
      %1562 = vmatpush1.msra.mxu0 0.0
      %1563 = vmatprep.subr.mxu0 0.0
      %1564 = vmatpush1.msra.mxu0 0.0
      %1565 = vmatprep.subr.mxu0 0.0
      %1566 = vmatpush1.msra.mxu0 0.0
      %1567 = vmatprep.mubr.f32.mxu0 0.0
      %v1568 = vand.u32 %v1247, 4294901760
      %v1569 = vsub.f32 %v1247, %v1568
      %v1570 = vand.u32 %v1569, 4294901760
      %1571 = vmatmul.mubr.f32.gmra.mrb[0].mxu0 %v1570
      %v1572 = vpop.f32.mrb[0].mxu0
      %v1573 = vadd.f32 %v1496, %v1572
      %v1574 = vpop.f32.mrb[0].mxu0
      %1575 = vdwg.mxu0
      %1576 = vmatprep.subr.mxu0 0.0
      %v1577 = vand.u32 %v1235, 4294901760
      %v1578 = vsub.f32 %v1235, %v1577
      %v1579 = vand.u32 %v1578, 4294901760
      %1580 = vmatpush1.msra.mxu0 %v1579
      %1581 = vmatprep.subr.mxu0 0.0
      %v1582 = vand.u32 %v1236, 4294901760
      %v1583 = vsub.f32 %v1236, %v1582
      %v1584 = vand.u32 %v1583, 4294901760
      %1585 = vmatpush1.msra.mxu0 %v1584
      %1586 = vmatprep.subr.mxu0 0.0
      %v1587 = vand.u32 %v1237, 4294901760
      %v1588 = vsub.f32 %v1237, %v1587
      %v1589 = vand.u32 %v1588, 4294901760
      %1590 = vmatpush1.msra.mxu0 %v1589
      %1591 = vmatprep.subr.mxu0 0.0
      %v1592 = vand.u32 %v1238, 4294901760
      %v1593 = vsub.f32 %v1238, %v1592
      %v1594 = vand.u32 %v1593, 4294901760
      %1595 = vmatpush1.msra.mxu0 %v1594
      %1596 = vmatprep.subr.mxu0 0.0
      %1597 = vmatpush1.msra.mxu0 0.0
      %1598 = vmatprep.subr.mxu0 0.0
      %1599 = vmatpush1.msra.mxu0 0.0
      %1600 = vmatprep.subr.mxu0 0.0
      %1601 = vmatpush1.msra.mxu0 0.0
      %1602 = vmatprep.subr.mxu0 0.0
      %1603 = vmatpush1.msra.mxu0 0.0
      %1604 = vmatprep.subr.mxu0 0.0
      %1605 = vmatpush1.msra.mxu0 0.0
      %1606 = vmatprep.subr.mxu0 0.0
      %1607 = vmatpush1.msra.mxu0 0.0
      %1608 = vmatprep.subr.mxu0 0.0
      %1609 = vmatpush1.msra.mxu0 0.0
      %1610 = vmatprep.subr.mxu0 0.0
      %1611 = vmatpush1.msra.mxu0 0.0
      %1612 = vmatprep.subr.mxu0 0.0
      %1613 = vmatpush1.msra.mxu0 0.0
      %1614 = vmatprep.subr.mxu0 0.0
      %1615 = vmatpush1.msra.mxu0 0.0
      %1616 = vmatprep.subr.mxu0 0.0
      %1617 = vmatpush1.msra.mxu0 0.0
      %1618 = vmatprep.subr.mxu0 0.0
      %1619 = vmatpush1.msra.mxu0 0.0
      %1620 = vmatprep.subr.mxu0 0.0
      %1621 = vmatpush1.msra.mxu0 0.0
      %1622 = vmatprep.subr.mxu0 0.0
      %1623 = vmatpush1.msra.mxu0 0.0
      %1624 = vmatprep.subr.mxu0 0.0
      %1625 = vmatpush1.msra.mxu0 0.0
      %1626 = vmatprep.subr.mxu0 0.0
      %1627 = vmatpush1.msra.mxu0 0.0
      %1628 = vmatprep.subr.mxu0 0.0
      %1629 = vmatpush1.msra.mxu0 0.0
      %1630 = vmatprep.subr.mxu0 0.0
      %1631 = vmatpush1.msra.mxu0 0.0
      %1632 = vmatprep.subr.mxu0 0.0
      %1633 = vmatpush1.msra.mxu0 0.0
      %1634 = vmatprep.subr.mxu0 0.0
      %1635 = vmatpush1.msra.mxu0 0.0
      %1636 = vmatprep.subr.mxu0 0.0
      %1637 = vmatpush1.msra.mxu0 0.0
      %1638 = vmatprep.subr.mxu0 0.0
      %1639 = vmatpush1.msra.mxu0 0.0
      %1640 = vmatprep.subr.mxu0 0.0
      %1641 = vmatpush1.msra.mxu0 0.0
      %1642 = vmatprep.subr.mxu0 0.0
      %1643 = vmatpush1.msra.mxu0 0.0
      %1644 = vmatprep.subr.mxu0 0.0
      %1645 = vmatpush1.msra.mxu0 0.0
      %1646 = vmatprep.subr.mxu0 0.0
      %1647 = vmatpush1.msra.mxu0 0.0
      %1648 = vmatprep.subr.mxu0 0.0
      %1649 = vmatpush1.msra.mxu0 0.0
      %1650 = vmatprep.subr.mxu0 0.0
      %1651 = vmatpush1.msra.mxu0 0.0
      %1652 = vmatprep.mubr.f32.mxu0 0.0
      %v1653 = vand.u32 %v1247, 4294901760
      %1654 = vmatmul.mubr.f32.gmra.mrb[0].mxu0 %v1653
      %v1655 = vpop.f32.mrb[0].mxu0
      %v1656 = vadd.f32 %v1573, %v1655
      %v1657 = vpop.f32.mrb[0].mxu0
      %1658 = vdwg.mxu0
      %1659 = vmatprep.subr.mxu0 0.0
      %v1660 = vand.u32 %v1235, 4294901760
      %1661 = vmatpush1.msra.mxu0 %v1660
      %1662 = vmatprep.subr.mxu0 0.0
      %v1663 = vand.u32 %v1236, 4294901760
      %1664 = vmatpush1.msra.mxu0 %v1663
      %1665 = vmatprep.subr.mxu0 0.0
      %v1666 = vand.u32 %v1237, 4294901760
      %1667 = vmatpush1.msra.mxu0 %v1666
      %1668 = vmatprep.subr.mxu0 0.0
      %v1669 = vand.u32 %v1238, 4294901760
      %1670 = vmatpush1.msra.mxu0 %v1669
      %1671 = vmatprep.subr.mxu0 0.0
      %1672 = vmatpush1.msra.mxu0 0.0
      %1673 = vmatprep.subr.mxu0 0.0
      %1674 = vmatpush1.msra.mxu0 0.0
      %1675 = vmatprep.subr.mxu0 0.0
      %1676 = vmatpush1.msra.mxu0 0.0
      %1677 = vmatprep.subr.mxu0 0.0
      %1678 = vmatpush1.msra.mxu0 0.0
      %1679 = vmatprep.subr.mxu0 0.0
      %1680 = vmatpush1.msra.mxu0 0.0
      %1681 = vmatprep.subr.mxu0 0.0
      %1682 = vmatpush1.msra.mxu0 0.0
      %1683 = vmatprep.subr.mxu0 0.0
      %1684 = vmatpush1.msra.mxu0 0.0
      %1685 = vmatprep.subr.mxu0 0.0
      %1686 = vmatpush1.msra.mxu0 0.0
      %1687 = vmatprep.subr.mxu0 0.0
      %1688 = vmatpush1.msra.mxu0 0.0
      %1689 = vmatprep.subr.mxu0 0.0
      %1690 = vmatpush1.msra.mxu0 0.0
      %1691 = vmatprep.subr.mxu0 0.0
      %1692 = vmatpush1.msra.mxu0 0.0
      %1693 = vmatprep.subr.mxu0 0.0
      %1694 = vmatpush1.msra.mxu0 0.0
      %1695 = vmatprep.subr.mxu0 0.0
      %1696 = vmatpush1.msra.mxu0 0.0
      %1697 = vmatprep.subr.mxu0 0.0
      %1698 = vmatpush1.msra.mxu0 0.0
      %1699 = vmatprep.subr.mxu0 0.0
      %1700 = vmatpush1.msra.mxu0 0.0
      %1701 = vmatprep.subr.mxu0 0.0
      %1702 = vmatpush1.msra.mxu0 0.0
      %1703 = vmatprep.subr.mxu0 0.0
      %1704 = vmatpush1.msra.mxu0 0.0
      %1705 = vmatprep.subr.mxu0 0.0
      %1706 = vmatpush1.msra.mxu0 0.0
      %1707 = vmatprep.subr.mxu0 0.0
      %1708 = vmatpush1.msra.mxu0 0.0
      %1709 = vmatprep.subr.mxu0 0.0
      %1710 = vmatpush1.msra.mxu0 0.0
      %1711 = vmatprep.subr.mxu0 0.0
      %1712 = vmatpush1.msra.mxu0 0.0
      %1713 = vmatprep.subr.mxu0 0.0
      %1714 = vmatpush1.msra.mxu0 0.0
      %1715 = vmatprep.subr.mxu0 0.0
      %1716 = vmatpush1.msra.mxu0 0.0
      %1717 = vmatprep.subr.mxu0 0.0
      %1718 = vmatpush1.msra.mxu0 0.0
      %1719 = vmatprep.subr.mxu0 0.0
      %1720 = vmatpush1.msra.mxu0 0.0
      %1721 = vmatprep.subr.mxu0 0.0
      %1722 = vmatpush1.msra.mxu0 0.0
      %1723 = vmatprep.subr.mxu0 0.0
      %1724 = vmatpush1.msra.mxu0 0.0
      %1725 = vmatprep.subr.mxu0 0.0
      %1726 = vmatpush1.msra.mxu0 0.0
      %1727 = vmatprep.mubr.f32.mxu0 0.0
      %v1728 = vand.u32 %v1247, 4294901760
      %1729 = vmatmul.mubr.f32.gmra.mrb[0].mxu0 %v1728
      %v1730 = vpop.f32.mrb[0].mxu0
      %v1731 = vadd.f32 %v1656, %v1730
      %v1732 = vpop.f32.mrb[0].mxu0
      %1733 = vdwg.mxu0
      %v1734 = vlaneseq
      %v1735 = vand.u32 %v1734, 127
      %v1736 = vmul.f32 %v1731, 1.442695
      %v1737 = vpow.pop %v1736
      %v1738 = vadd.f32 %v1737, 1.0
      %v1739 = vlog2.pop %v1738
      %v1740 = vmul.f32 %v1739, 0.6931472
      %v1741 = vadd.f32 %v1740, 1e-06
      %vm1742 = vcmp.eq.s32.totalorder %v1735, 1
      %v1743 = vsel %vm1742, %v1741, %v1731
      %vm1744 = vcmask 31744
      %1745 = vst.msk [vmem:[%s273] sm:$0xff] %vm1744, %v1743
      %p1746 = scmp.lt.s32.totalorder %s18, 1
      %s1747 = scalar_select %p1746, %s18, 1
      %s1748 = smul.addr %s1747, 8
      %s1749 = scalar_lea.vmem %s7, %s1748
      // Predicated region
      $region49: #{dnn_ensemble_forward.1} parent=47 // pred_check
        %p1750 = pneg %p188
      $region50: #{dnn_ensemble_forward.1} parent=47 // pred_check_branch
        %1752 = sbr.rel (%p1750) target = $region52
      $region51: #{dnn_ensemble_forward.1} parent=47 // pred_region
        _
      $region52: #{dnn_ensemble_forward.1} parent=47 // pred_fallthru
        _
    $region48: #{dnn_ensemble_forward.1} parent=5 // pred_fallthru
      _
    %p1753 = scmp.le.s32.totalorder 2, %s13
    // Predicated region
    $region53: #{dnn_ensemble_forward.1} parent=5 // pred_check
      %p1754 = pneg %p1753
    $region54: #{dnn_ensemble_forward.1} parent=5 // pred_check_branch
      %1756 = sbr.rel (%p1754) target = $region56
    $region55: #{dnn_ensemble_forward.1} parent=5 // pred_region
      %s1757 = ssub.s32 %s13, 2
      // Predicated region
      $region57: #{dnn_ensemble_forward.1} parent=55 // pred_check
        %p1758 = pneg %p194
      $region58: #{dnn_ensemble_forward.1} parent=55 // pred_check_branch
        %1760 = sbr.rel (%p1758) target = $region60
      $region59: #{dnn_ensemble_forward.1} parent=55 // pred_region
        %p1761 = scmp.lt.s32.totalorder %s19, 1
        %s1762 = scalar_select %p1761, %s19, 1
        %s1763 = smul.addr %s1762, 8
        %s1764 = scalar_lea.vmem %s7, %s1763
      $region60: #{dnn_ensemble_forward.1} parent=55 // pred_fallthru
        _
    $region56: #{dnn_ensemble_forward.1} parent=5 // pred_fallthru
      _
  $region6: #{dnn_ensemble_forward.1} parent=0 // loop_footer
    %s17 = sadd.s32 1, %s13
  $region7: #{dnn_ensemble_forward.1} parent=0 // loop_footer_branch
    %12 = sbr.rel target = $region3
  $region8: #{dnn_ensemble_forward.1} parent=0 // loop_exit
    _

</llo_original>
